<compile_context>
chip_gen: v7x
topology: tpu7x:2x2x1
jax: 0.10.0
libtpu: 0.0.40
codegen_flags: <defaults>
</compile_context>

<pallas_src>
import math

import jax
import jax.numpy as jnp
from jax.experimental import pallas as pl
from jax.experimental.pallas import tpu as pltpu

BN_EPS = 1e-5
OUT_PAD = 128  # lane-dense classifier width (padded, sliced back in wrapper)


# ----------------------------------------------------------------------------
# Pallas kernel: whole forward pass for one (TM, F) batch tile.
# ----------------------------------------------------------------------------
def mdm_kernel(
    x_ref,                                   # (TM, F) bf16
    w_in_ref, b_in_ref,                      # input layer (BN folded)
    w11_ref, b11_ref, w12_ref, b12_ref,      # res block 1 (256->256)
    w2f_ref, b2f_ref, w22_ref, b22_ref,      # res block 2 (256->128), fused skip
    w3f_ref, b3f_ref, w32_ref, b32_ref,      # res block 3 (128->64 pad 128), fused skip
    wo1_ref, bo1_ref, wo2_ref, bo2_ref,      # output layer (padded to 128 lanes)
    o_ref,                                   # (TM, 128) f32
):
    def dense(h, w_ref, b_ref):
        # bf16 x bf16 on the MXU with f32 accumulation; bias add in f32.
        return (
            jnp.dot(h.astype(jnp.bfloat16), w_ref[...],
                    preferred_element_type=jnp.float32)
            + b_ref[...]
        )

    def relu(h):
        return jnp.maximum(h, 0.0)

    x = x_ref[...]  # already bf16

    # input layer: Linear(+BN folded) -> ReLU -> Dropout(identity)
    h = relu(dense(x, w_in_ref, b_in_ref))

    # residual block 1: 256 -> 256, identity skip
    r = h
    t = relu(dense(h, w11_ref, b11_ref))
    t = dense(t, w12_ref, b12_ref)
    h = relu(t + r)

    # residual block 2: 256 -> 128, linear skip fused into one 256-wide matmul
    u = dense(h, w2f_ref, b2f_ref)          # [:, :128] = main pre-ReLU, [:, 128:] = skip
    t = relu(u[:, :128])
    r = u[:, 128:]
    t = dense(t, w22_ref, b22_ref)
    h = relu(t + r)

    # residual block 3: 128 -> 64 (zero-padded to 128 lanes), fused skip
    u = dense(h, w3f_ref, b3f_ref)          # (TM, 256); lanes 64..127 of each half are 0
    t = relu(u[:, :128])
    r = u[:, 128:]
    t = dense(t, w32_ref, b32_ref)
    h = relu(t + r)

    # output layer: Linear(+BN) -> ReLU -> Dropout(id) -> Linear (padded to 128)
    h = relu(dense(h, wo1_ref, bo1_ref))
    o_ref[...] = dense(h, wo2_ref, bo2_ref).astype(o_ref.dtype)


# ----------------------------------------------------------------------------
# Parameter construction (deterministic) + BatchNorm folding (plain JAX glue).
# ----------------------------------------------------------------------------
def _linear_params(key, fan_in, fan_out):
    kw, kb = jax.random.split(key)
    bound = 1.0 / jnp.sqrt(jnp.float32(fan_in))
    w = jax.random.uniform(kw, (fan_in, fan_out), jnp.float32, -bound, bound)
    b = jax.random.uniform(kb, (1, fan_out), jnp.float32, -bound, bound)
    return w, b


def _bn_params(key, feat):
    kg, kb, km, kv = jax.random.split(key, 4)
    gamma = 1.0 + 0.1 * jax.random.normal(kg, (feat,), jnp.float32)
    beta = 0.1 * jax.random.normal(kb, (feat,), jnp.float32)
    mean = 0.1 * jax.random.normal(km, (feat,), jnp.float32)
    var = jnp.abs(1.0 + 0.1 * jax.random.normal(kv, (feat,), jnp.float32))
    return gamma, beta, mean, var


def _fold_bn(w, b, bn):
    """Fold y = BN(x @ w + b) (eval mode) into an effective (w, b)."""
    gamma, beta, mean, var = bn
    scale = gamma / jnp.sqrt(var + BN_EPS)
    w_eff = w * scale[None, :]
    b_eff = (b - mean[None, :]) * scale[None, :] + beta[None, :]
    return w_eff, b_eff


def make_params(key, input_size, num_classes):
    keys = jax.random.split(key, 32)
    ki = iter(range(32))

    def lin(fi, fo):
        return _linear_params(keys[next(ki)], fi, fo)

    def bn(f):
        return _bn_params(keys[next(ki)], f)

    p = {}
    # input layer
    p["w_in"], p["b_in"] = _fold_bn(*lin(input_size, 256), bn(256))
    # res block 1 (256 -> 256), identity skip
    p["w11"], p["b11"] = _fold_bn(*lin(256, 256), bn(256))
    p["w12"], p["b12"] = _fold_bn(*lin(256, 256), bn(256))
    # res block 2 (256 -> 128), linear skip (no BN on skip)
    p["w21"], p["b21"] = _fold_bn(*lin(256, 128), bn(128))
    p["w22"], p["b22"] = _fold_bn(*lin(128, 128), bn(128))
    p["ws2"], p["bs2"] = lin(256, 128)
    # res block 3 (128 -> 64), linear skip (no BN on skip)
    p["w31"], p["b31"] = _fold_bn(*lin(128, 64), bn(64))
    p["w32"], p["b32"] = _fold_bn(*lin(64, 64), bn(64))
    p["ws3"], p["bs3"] = lin(128, 64)
    # output layer
    p["wo1"], p["bo1"] = _fold_bn(*lin(64, 32), bn(32))
    p["wo2"], p["bo2"] = lin(32, num_classes)
    return p


# ----------------------------------------------------------------------------
# Packing glue: fuse shortcut matmuls, zero-pad narrow dims to 128 lanes,
# cast weights to bf16 (biases stay f32).
# ----------------------------------------------------------------------------
def _pad2(a, rows, cols):
    return jnp.pad(a, ((0, rows - a.shape[0]), (0, cols - a.shape[1])))


def pack_params(p):
    bf = lambda w: w.astype(jnp.bfloat16)
    f32 = lambda b: b.astype(jnp.float32)

    # fused block 2: [main | skip] along N -> one 256x256 matmul
    w2f = jnp.concatenate([p["w21"], p["ws2"]], axis=1)            # (256, 256)
    b2f = jnp.concatenate([p["b21"], p["bs2"]], axis=1)            # (1, 256)
    # fused block 3 (64-wide halves padded to 128 lanes each)
    w3f = jnp.concatenate(
        [_pad2(p["w31"], 128, 128), _pad2(p["ws3"], 128, 128)], axis=1)  # (128, 256)
    b3f = jnp.concatenate(
        [_pad2(p["b31"], 1, 128), _pad2(p["bs3"], 1, 128)], axis=1)      # (1, 256)
    # padded tail
    w32p, b32p = _pad2(p["w32"], 128, 128), _pad2(p["b32"], 1, 128)
    wo1p, bo1p = _pad2(p["wo1"], 128, 128), _pad2(p["bo1"], 1, 128)
    wo2p, bo2p = _pad2(p["wo2"], 128, OUT_PAD), _pad2(p["bo2"], 1, OUT_PAD)

    return [
        bf(p["w_in"]), f32(p["b_in"]),
        bf(p["w11"]), f32(p["b11"]), bf(p["w12"]), f32(p["b12"]),
        bf(w2f), f32(b2f), bf(p["w22"]), f32(p["b22"]),
        bf(w3f), f32(b3f), bf(w32p), f32(b32p),
        bf(wo1p), f32(bo1p), bf(wo2p), f32(bo2p),
    ]


def _round_up(a, m):
    return (a + m - 1) // m * m


# ----------------------------------------------------------------------------
# Wrapper: batch-tiled pallas_call with VMEM-resident weights.
# ----------------------------------------------------------------------------
def medical_diagnosis_forward(x, params):
    num_classes = params["wo2"].shape[1]
    B, F = x.shape
    packed = pack_params(params)

    # Batch tile: 256 rows for serving batches, round up to a sublane multiple
    # (8) for tiny batches.
    TM = 256 if B >= 256 else _round_up(B, 8)
    B_pad = _round_up(B, TM)
    xp = x if B_pad == B else jnp.pad(x, ((0, B_pad - B), (0, 0)))
    xp = xp.astype(jnp.bfloat16)

    grid = (pl.cdiv(B_pad, TM),)

    in_specs = [pl.BlockSpec((TM, F), lambda i: (i, 0))]
    for a in packed:
        # Constant index_map: weights/biases are loaded once and stay resident.
        in_specs.append(pl.BlockSpec(a.shape, lambda i: (0, 0)))
    out_specs = pl.BlockSpec((TM, OUT_PAD), lambda i: (i, 0))

    # Advisory cost estimate so XLA knows how cheap/expensive this kernel is.
    weight_elems = sum(
        math.prod(a.shape) for a in packed if a.dtype == jnp.bfloat16)
    flops = 2 * B_pad * weight_elems
    bytes_accessed = (
        B_pad * F * 2                      # bf16 x
        + B_pad * OUT_PAD * 4              # f32 out
        + sum(math.prod(a.shape) * a.dtype.itemsize for a in packed)
    )
    cost = pl.CostEstimate(flops=flops, transcendentals=0,
                           bytes_accessed=bytes_accessed)

    out = pl.pallas_call(
        mdm_kernel,
        out_shape=jax.ShapeDtypeStruct((B_pad, OUT_PAD), jnp.float32),
        grid=grid,
        in_specs=in_specs,
        out_specs=out_specs,
        compiler_params=pltpu.CompilerParams(
            dimension_semantics=("parallel",),   # megacore sharding on v7x
            vmem_limit_bytes=16 * 1024 * 1024,   # actual need << 16 MiB
        ),
        cost_estimate=cost,
    )(xp, *packed)

    return out[:B, :num_classes]


# ----------------------------------------------------------------------------
# Pure-JAX references.
# ----------------------------------------------------------------------------
def reference_forward(x, p):
    """Full-f32 reference with the true (unquantized) folded parameters."""
    relu = lambda h: jnp.maximum(h, 0.0)
    dense = lambda h, w, b: h @ w + b
    h = relu(dense(x, p["w_in"], p["b_in"]))
    r = h
    h = relu(dense(relu(dense(h, p["w11"], p["b11"])), p["w12"], p["b12"]) + r)
    r = dense(h, p["ws2"], p["bs2"])
    h = relu(dense(relu(dense(h, p["w21"], p["b21"])), p["w22"], p["b22"]) + r)
    r = dense(h, p["ws3"], p["bs3"])
    h = relu(dense(relu(dense(h, p["w31"], p["b31"])), p["w32"], p["b32"]) + r)
    h = relu(dense(h, p["wo1"], p["bo1"]))
    return dense(h, p["wo2"], p["bo2"])


def quantized_reference_forward(x, p):
    """Mirrors the kernel's bf16-weight / bf16-activation, f32-accumulate math."""
    bf = lambda a: a.astype(jnp.bfloat16).astype(jnp.float32)
    relu = lambda h: jnp.maximum(h, 0.0)
    dense = lambda h, w, b: bf(h) @ bf(w) + b
    h = relu(dense(x, p["w_in"], p["b_in"]))
    r = h
    h = relu(dense(relu(dense(h, p["w11"], p["b11"])), p["w12"], p["b12"]) + r)
    r = dense(h, p["ws2"], p["bs2"])
    h = relu(dense(relu(dense(h, p["w21"], p["b21"])), p["w22"], p["b22"]) + r)
    r = dense(h, p["ws3"], p["bs3"])
    h = relu(dense(relu(dense(h, p["w31"], p["b31"])), p["w32"], p["b32"]) + r)
    h = relu(dense(h, p["wo1"], p["bo1"]))
    return dense(h, p["wo2"], p["bo2"])


if __name__ == "__main__":
    BATCH = 8
    INPUT_SIZE = 32
    NUM_CLASSES = 5  # synthetic stand-in for len(np.unique(y_train))

    root = jax.random.PRNGKey(0)
    kx, kp = jax.random.split(root)
    x = jax.random.normal(kx, (BATCH, INPUT_SIZE), jnp.float32)
    params = make_params(kp, INPUT_SIZE, NUM_CLASSES)

    out = jax.block_until_ready(medical_diagnosis_forward(x, params))
    ref_q = jax.block_until_ready(quantized_reference_forward(x, params))
    ref_f32 = jax.block_until_ready(reference_forward(x, params))

    assert out.shape == (BATCH, NUM_CLASSES)
    assert jnp.allclose(out, ref_q, atol=1e-3, rtol=1e-3), (
        "mismatch vs quantized JAX reference: max |diff| = "
        f"{float(jnp.max(jnp.abs(out - ref_q)))}")
    # Informational: deviation from the full-f32 model due to bf16 weights.
    _ = float(jnp.max(jnp.abs(out - ref_f32)))

    # Exercise the multi-step batch grid (TM=256, grid>1) on a larger batch.
    x_big = jax.random.normal(jax.random.PRNGKey(1), (512 + 32, INPUT_SIZE),
                              jnp.float32)
    out_big = jax.block_until_ready(medical_diagnosis_forward(x_big, params))
    ref_big = quantized_reference_forward(x_big, params)
    assert out_big.shape == (512 + 32, NUM_CLASSES)
    assert jnp.allclose(out_big, ref_big, atol=1e-3, rtol=1e-3), \
        "mismatch vs quantized JAX reference (large batch)"

    print("KERNEL_OK")
</pallas_src>

<mosaic_0001>
module attributes {stable_mosaic.version = 11 : i64} {
  func.func @mdm_kernel(%arg0: i32, %arg1: memref<8x32xbf16, #tpu.memory_space<vmem>>, %arg2: memref<32x256xbf16, #tpu.memory_space<vmem>>, %arg3: memref<1x256xf32, #tpu.memory_space<vmem>>, %arg4: memref<256x256xbf16, #tpu.memory_space<vmem>>, %arg5: memref<1x256xf32, #tpu.memory_space<vmem>>, %arg6: memref<256x256xbf16, #tpu.memory_space<vmem>>, %arg7: memref<1x256xf32, #tpu.memory_space<vmem>>, %arg8: memref<256x256xbf16, #tpu.memory_space<vmem>>, %arg9: memref<1x256xf32, #tpu.memory_space<vmem>>, %arg10: memref<128x128xbf16, #tpu.memory_space<vmem>>, %arg11: memref<1x128xf32, #tpu.memory_space<vmem>>, %arg12: memref<128x256xbf16, #tpu.memory_space<vmem>>, %arg13: memref<1x256xf32, #tpu.memory_space<vmem>>, %arg14: memref<128x128xbf16, #tpu.memory_space<vmem>>, %arg15: memref<1x128xf32, #tpu.memory_space<vmem>>, %arg16: memref<128x128xbf16, #tpu.memory_space<vmem>>, %arg17: memref<1x128xf32, #tpu.memory_space<vmem>>, %arg18: memref<128x128xbf16, #tpu.memory_space<vmem>>, %arg19: memref<1x128xf32, #tpu.memory_space<vmem>>, %arg20: memref<8x128xf32, #tpu.memory_space<vmem>>) attributes {dimension_semantics = [#tpu.dimension_semantics<parallel>], iteration_bounds = array<i64: 1>, scalar_prefetch = 0 : i64, scratch_operands = 0 : i64, tpu.core_type = #tpu.core_type<tc>, window_params = [{transform_indices = @transform_0, window_bounds = array<i64: 8, 32>}, {pipeline_mode = #tpu.pipeline_mode<synchronous>, transform_indices = @transform_1, window_bounds = array<i64: 32, 256>}, {pipeline_mode = #tpu.pipeline_mode<synchronous>, transform_indices = @transform_2, window_bounds = array<i64: 1, 256>}, {pipeline_mode = #tpu.pipeline_mode<synchronous>, transform_indices = @transform_3, window_bounds = array<i64: 256, 256>}, {pipeline_mode = #tpu.pipeline_mode<synchronous>, transform_indices = @transform_4, window_bounds = array<i64: 1, 256>}, {pipeline_mode = #tpu.pipeline_mode<synchronous>, transform_indices = @transform_5, window_bounds = array<i64: 256, 256>}, {pipeline_mode = #tpu.pipeline_mode<synchronous>, transform_indices = @transform_6, window_bounds = array<i64: 1, 256>}, {pipeline_mode = #tpu.pipeline_mode<synchronous>, transform_indices = @transform_7, window_bounds = array<i64: 256, 256>}, {pipeline_mode = #tpu.pipeline_mode<synchronous>, transform_indices = @transform_8, window_bounds = array<i64: 1, 256>}, {pipeline_mode = #tpu.pipeline_mode<synchronous>, transform_indices = @transform_9, window_bounds = array<i64: 128, 128>}, {pipeline_mode = #tpu.pipeline_mode<synchronous>, transform_indices = @transform_10, window_bounds = array<i64: 1, 128>}, {pipeline_mode = #tpu.pipeline_mode<synchronous>, transform_indices = @transform_11, window_bounds = array<i64: 128, 256>}, {pipeline_mode = #tpu.pipeline_mode<synchronous>, transform_indices = @transform_12, window_bounds = array<i64: 1, 256>}, {pipeline_mode = #tpu.pipeline_mode<synchronous>, transform_indices = @transform_13, window_bounds = array<i64: 128, 128>}, {pipeline_mode = #tpu.pipeline_mode<synchronous>, transform_indices = @transform_14, window_bounds = array<i64: 1, 128>}, {pipeline_mode = #tpu.pipeline_mode<synchronous>, transform_indices = @transform_15, window_bounds = array<i64: 128, 128>}, {pipeline_mode = #tpu.pipeline_mode<synchronous>, transform_indices = @transform_16, window_bounds = array<i64: 1, 128>}, {pipeline_mode = #tpu.pipeline_mode<synchronous>, transform_indices = @transform_17, window_bounds = array<i64: 128, 128>}, {pipeline_mode = #tpu.pipeline_mode<synchronous>, transform_indices = @transform_18, window_bounds = array<i64: 1, 128>}, {transform_indices = @transform_19, window_bounds = array<i64: 8, 128>}]} {
    %c0 = arith.constant 0 : index
    %c0_0 = arith.constant 0 : index
    %0 = vector.load %arg1[%c0, %c0_0] : memref<8x32xbf16, #tpu.memory_space<vmem>>, vector<8x32xbf16>
    %c0_1 = arith.constant 0 : index
    %c0_2 = arith.constant 0 : index
    %1 = vector.load %arg2[%c0_1, %c0_2] : memref<32x256xbf16, #tpu.memory_space<vmem>>, vector<32x256xbf16>
    %cst = arith.constant dense<0.000000e+00> : vector<8x256xf32>
    %2 = tpu.matmul %0, %1, %cst {dimension_numbers = #tpu.dot_dimension_numbers<[1], [0], [0], [1], [0, 0, 1, 1], [], []>} : vector<8x32xbf16>, vector<32x256xbf16>, vector<8x256xf32> -> vector<8x256xf32>
    %c0_3 = arith.constant 0 : index
    %c0_4 = arith.constant 0 : index
    %3 = vector.load %arg3[%c0_3, %c0_4] : memref<1x256xf32, #tpu.memory_space<vmem>>, vector<1x256xf32>
    %4 = vector.broadcast %3 : vector<1x256xf32> to vector<8x256xf32>
    %5 = arith.addf %2, %4 : vector<8x256xf32>
    %cst_5 = arith.constant 0.000000e+00 : f32
    %6 = vector.broadcast %cst_5 : f32 to vector<8x256xf32>
    %7 = arith.maximumf %5, %6 : vector<8x256xf32>
    %8 = arith.truncf %7 : vector<8x256xf32> to vector<8x256xbf16>
    %c0_6 = arith.constant 0 : index
    %c0_7 = arith.constant 0 : index
    %9 = vector.load %arg4[%c0_6, %c0_7] : memref<256x256xbf16, #tpu.memory_space<vmem>>, vector<256x256xbf16>
    %cst_8 = arith.constant dense<0.000000e+00> : vector<8x256xf32>
    %10 = tpu.matmul %8, %9, %cst_8 {dimension_numbers = #tpu.dot_dimension_numbers<[1], [0], [0], [1], [0, 0, 1, 1], [], []>} : vector<8x256xbf16>, vector<256x256xbf16>, vector<8x256xf32> -> vector<8x256xf32>
    %c0_9 = arith.constant 0 : index
    %c0_10 = arith.constant 0 : index
    %11 = vector.load %arg5[%c0_9, %c0_10] : memref<1x256xf32, #tpu.memory_space<vmem>>, vector<1x256xf32>
    %12 = vector.broadcast %11 : vector<1x256xf32> to vector<8x256xf32>
    %13 = arith.addf %10, %12 : vector<8x256xf32>
    %cst_11 = arith.constant 0.000000e+00 : f32
    %14 = vector.broadcast %cst_11 : f32 to vector<8x256xf32>
    %15 = arith.maximumf %13, %14 : vector<8x256xf32>
    %16 = arith.truncf %15 : vector<8x256xf32> to vector<8x256xbf16>
    %c0_12 = arith.constant 0 : index
    %c0_13 = arith.constant 0 : index
    %17 = vector.load %arg6[%c0_12, %c0_13] : memref<256x256xbf16, #tpu.memory_space<vmem>>, vector<256x256xbf16>
    %cst_14 = arith.constant dense<0.000000e+00> : vector<8x256xf32>
    %18 = tpu.matmul %16, %17, %cst_14 {dimension_numbers = #tpu.dot_dimension_numbers<[1], [0], [0], [1], [0, 0, 1, 1], [], []>} : vector<8x256xbf16>, vector<256x256xbf16>, vector<8x256xf32> -> vector<8x256xf32>
    %c0_15 = arith.constant 0 : index
    %c0_16 = arith.constant 0 : index
    %19 = vector.load %arg7[%c0_15, %c0_16] : memref<1x256xf32, #tpu.memory_space<vmem>>, vector<1x256xf32>
    %20 = vector.broadcast %19 : vector<1x256xf32> to vector<8x256xf32>
    %21 = arith.addf %18, %20 : vector<8x256xf32>
    %22 = arith.addf %21, %7 : vector<8x256xf32>
    %cst_17 = arith.constant 0.000000e+00 : f32
    %23 = vector.broadcast %cst_17 : f32 to vector<8x256xf32>
    %24 = arith.maximumf %22, %23 : vector<8x256xf32>
    %25 = arith.truncf %24 : vector<8x256xf32> to vector<8x256xbf16>
    %c0_18 = arith.constant 0 : index
    %c0_19 = arith.constant 0 : index
    %26 = vector.load %arg8[%c0_18, %c0_19] : memref<256x256xbf16, #tpu.memory_space<vmem>>, vector<256x256xbf16>
    %cst_20 = arith.constant dense<0.000000e+00> : vector<8x256xf32>
    %27 = tpu.matmul %25, %26, %cst_20 {dimension_numbers = #tpu.dot_dimension_numbers<[1], [0], [0], [1], [0, 0, 1, 1], [], []>} : vector<8x256xbf16>, vector<256x256xbf16>, vector<8x256xf32> -> vector<8x256xf32>
    %c0_21 = arith.constant 0 : index
    %c0_22 = arith.constant 0 : index
    %28 = vector.load %arg9[%c0_21, %c0_22] : memref<1x256xf32, #tpu.memory_space<vmem>>, vector<1x256xf32>
    %29 = vector.broadcast %28 : vector<1x256xf32> to vector<8x256xf32>
    %30 = arith.addf %27, %29 : vector<8x256xf32>
    %31 = vector.extract_strided_slice %30 {offsets = [0, 0], sizes = [8, 128], strides = [1, 1]} : vector<8x256xf32> to vector<8x128xf32>
    %cst_23 = arith.constant 0.000000e+00 : f32
    %32 = vector.broadcast %cst_23 : f32 to vector<8x128xf32>
    %33 = arith.maximumf %31, %32 : vector<8x128xf32>
    %34 = vector.extract_strided_slice %30 {offsets = [0, 128], sizes = [8, 128], strides = [1, 1]} : vector<8x256xf32> to vector<8x128xf32>
    %35 = arith.truncf %33 : vector<8x128xf32> to vector<8x128xbf16>
    %c0_24 = arith.constant 0 : index
    %c0_25 = arith.constant 0 : index
    %36 = vector.load %arg10[%c0_24, %c0_25] : memref<128x128xbf16, #tpu.memory_space<vmem>>, vector<128x128xbf16>
    %cst_26 = arith.constant dense<0.000000e+00> : vector<8x128xf32>
    %37 = tpu.matmul %35, %36, %cst_26 {dimension_numbers = #tpu.dot_dimension_numbers<[1], [0], [0], [1], [0, 0, 1, 1], [], []>} : vector<8x128xbf16>, vector<128x128xbf16>, vector<8x128xf32> -> vector<8x128xf32>
    %c0_27 = arith.constant 0 : index
    %c0_28 = arith.constant 0 : index
    %38 = vector.load %arg11[%c0_27, %c0_28] : memref<1x128xf32, #tpu.memory_space<vmem>>, vector<1x128xf32>
    %39 = vector.broadcast %38 : vector<1x128xf32> to vector<8x128xf32>
    %40 = arith.addf %37, %39 : vector<8x128xf32>
    %41 = arith.addf %40, %34 : vector<8x128xf32>
    %cst_29 = arith.constant 0.000000e+00 : f32
    %42 = vector.broadcast %cst_29 : f32 to vector<8x128xf32>
    %43 = arith.maximumf %41, %42 : vector<8x128xf32>
    %44 = arith.truncf %43 : vector<8x128xf32> to vector<8x128xbf16>
    %c0_30 = arith.constant 0 : index
    %c0_31 = arith.constant 0 : index
    %45 = vector.load %arg12[%c0_30, %c0_31] : memref<128x256xbf16, #tpu.memory_space<vmem>>, vector<128x256xbf16>
    %cst_32 = arith.constant dense<0.000000e+00> : vector<8x256xf32>
    %46 = tpu.matmul %44, %45, %cst_32 {dimension_numbers = #tpu.dot_dimension_numbers<[1], [0], [0], [1], [0, 0, 1, 1], [], []>} : vector<8x128xbf16>, vector<128x256xbf16>, vector<8x256xf32> -> vector<8x256xf32>
    %c0_33 = arith.constant 0 : index
    %c0_34 = arith.constant 0 : index
    %47 = vector.load %arg13[%c0_33, %c0_34] : memref<1x256xf32, #tpu.memory_space<vmem>>, vector<1x256xf32>
    %48 = vector.broadcast %47 : vector<1x256xf32> to vector<8x256xf32>
    %49 = arith.addf %46, %48 : vector<8x256xf32>
    %50 = vector.extract_strided_slice %49 {offsets = [0, 0], sizes = [8, 128], strides = [1, 1]} : vector<8x256xf32> to vector<8x128xf32>
    %cst_35 = arith.constant 0.000000e+00 : f32
    %51 = vector.broadcast %cst_35 : f32 to vector<8x128xf32>
    %52 = arith.maximumf %50, %51 : vector<8x128xf32>
    %53 = vector.extract_strided_slice %49 {offsets = [0, 128], sizes = [8, 128], strides = [1, 1]} : vector<8x256xf32> to vector<8x128xf32>
    %54 = arith.truncf %52 : vector<8x128xf32> to vector<8x128xbf16>
    %c0_36 = arith.constant 0 : index
    %c0_37 = arith.constant 0 : index
    %55 = vector.load %arg14[%c0_36, %c0_37] : memref<128x128xbf16, #tpu.memory_space<vmem>>, vector<128x128xbf16>
    %cst_38 = arith.constant dense<0.000000e+00> : vector<8x128xf32>
    %56 = tpu.matmul %54, %55, %cst_38 {dimension_numbers = #tpu.dot_dimension_numbers<[1], [0], [0], [1], [0, 0, 1, 1], [], []>} : vector<8x128xbf16>, vector<128x128xbf16>, vector<8x128xf32> -> vector<8x128xf32>
    %c0_39 = arith.constant 0 : index
    %c0_40 = arith.constant 0 : index
    %57 = vector.load %arg15[%c0_39, %c0_40] : memref<1x128xf32, #tpu.memory_space<vmem>>, vector<1x128xf32>
    %58 = vector.broadcast %57 : vector<1x128xf32> to vector<8x128xf32>
    %59 = arith.addf %56, %58 : vector<8x128xf32>
    %60 = arith.addf %59, %53 : vector<8x128xf32>
    %cst_41 = arith.constant 0.000000e+00 : f32
    %61 = vector.broadcast %cst_41 : f32 to vector<8x128xf32>
    %62 = arith.maximumf %60, %61 : vector<8x128xf32>
    %63 = arith.truncf %62 : vector<8x128xf32> to vector<8x128xbf16>
    %c0_42 = arith.constant 0 : index
    %c0_43 = arith.constant 0 : index
    %64 = vector.load %arg16[%c0_42, %c0_43] : memref<128x128xbf16, #tpu.memory_space<vmem>>, vector<128x128xbf16>
    %cst_44 = arith.constant dense<0.000000e+00> : vector<8x128xf32>
    %65 = tpu.matmul %63, %64, %cst_44 {dimension_numbers = #tpu.dot_dimension_numbers<[1], [0], [0], [1], [0, 0, 1, 1], [], []>} : vector<8x128xbf16>, vector<128x128xbf16>, vector<8x128xf32> -> vector<8x128xf32>
    %c0_45 = arith.constant 0 : index
    %c0_46 = arith.constant 0 : index
    %66 = vector.load %arg17[%c0_45, %c0_46] : memref<1x128xf32, #tpu.memory_space<vmem>>, vector<1x128xf32>
    %67 = vector.broadcast %66 : vector<1x128xf32> to vector<8x128xf32>
    %68 = arith.addf %65, %67 : vector<8x128xf32>
    %cst_47 = arith.constant 0.000000e+00 : f32
    %69 = vector.broadcast %cst_47 : f32 to vector<8x128xf32>
    %70 = arith.maximumf %68, %69 : vector<8x128xf32>
    %71 = arith.truncf %70 : vector<8x128xf32> to vector<8x128xbf16>
    %c0_48 = arith.constant 0 : index
    %c0_49 = arith.constant 0 : index
    %72 = vector.load %arg18[%c0_48, %c0_49] : memref<128x128xbf16, #tpu.memory_space<vmem>>, vector<128x128xbf16>
    %cst_50 = arith.constant dense<0.000000e+00> : vector<8x128xf32>
    %73 = tpu.matmul %71, %72, %cst_50 {dimension_numbers = #tpu.dot_dimension_numbers<[1], [0], [0], [1], [0, 0, 1, 1], [], []>} : vector<8x128xbf16>, vector<128x128xbf16>, vector<8x128xf32> -> vector<8x128xf32>
    %c0_51 = arith.constant 0 : index
    %c0_52 = arith.constant 0 : index
    %74 = vector.load %arg19[%c0_51, %c0_52] : memref<1x128xf32, #tpu.memory_space<vmem>>, vector<1x128xf32>
    %75 = vector.broadcast %74 : vector<1x128xf32> to vector<8x128xf32>
    %76 = arith.addf %73, %75 : vector<8x128xf32>
    %c0_53 = arith.constant 0 : index
    %c0_54 = arith.constant 0 : index
    %77 = vector.load %arg20[%c0_53, %c0_54] : memref<8x128xf32, #tpu.memory_space<vmem>>, vector<8x128xf32>
    tpu.vector_store %arg20[%c0_53, %c0_54], %76 {strides = array<i32>} : memref<8x128xf32, #tpu.memory_space<vmem>>, vector<8x128xf32>,
    return
  }
  func.func @transform_0(%arg0: i32) -> (i32, i32) {
    %c0_i32 = arith.constant 0 : i32
    %c0_i32_0 = arith.constant 0 : i32
    return %arg0, %c0_i32 : i32, i32
  }
  func.func @transform_1(%arg0: i32) -> (i32, i32) {
    %c0_i32 = arith.constant 0 : i32
    %c0_i32_0 = arith.constant 0 : i32
    %c0_i32_1 = arith.constant 0 : i32
    return %c0_i32, %c0_i32_0 : i32, i32
  }
  func.func @transform_2(%arg0: i32) -> (i32, i32) {
    %c0_i32 = arith.constant 0 : i32
    %c0_i32_0 = arith.constant 0 : i32
    %c0_i32_1 = arith.constant 0 : i32
    return %c0_i32, %c0_i32_0 : i32, i32
  }
  func.func @transform_3(%arg0: i32) -> (i32, i32) {
    %c0_i32 = arith.constant 0 : i32
    %c0_i32_0 = arith.constant 0 : i32
    %c0_i32_1 = arith.constant 0 : i32
    return %c0_i32, %c0_i32_0 : i32, i32
  }
  func.func @transform_4(%arg0: i32) -> (i32, i32) {
    %c0_i32 = arith.constant 0 : i32
    %c0_i32_0 = arith.constant 0 : i32
    %c0_i32_1 = arith.constant 0 : i32
    return %c0_i32, %c0_i32_0 : i32, i32
  }
  func.func @transform_5(%arg0: i32) -> (i32, i32) {
    %c0_i32 = arith.constant 0 : i32
    %c0_i32_0 = arith.constant 0 : i32
    %c0_i32_1 = arith.constant 0 : i32
    return %c0_i32, %c0_i32_0 : i32, i32
  }
  func.func @transform_6(%arg0: i32) -> (i32, i32) {
    %c0_i32 = arith.constant 0 : i32
    %c0_i32_0 = arith.constant 0 : i32
    %c0_i32_1 = arith.constant 0 : i32
    return %c0_i32, %c0_i32_0 : i32, i32
  }
  func.func @transform_7(%arg0: i32) -> (i32, i32) {
    %c0_i32 = arith.constant 0 : i32
    %c0_i32_0 = arith.constant 0 : i32
    %c0_i32_1 = arith.constant 0 : i32
    return %c0_i32, %c0_i32_0 : i32, i32
  }
  func.func @transform_8(%arg0: i32) -> (i32, i32) {
    %c0_i32 = arith.constant 0 : i32
    %c0_i32_0 = arith.constant 0 : i32
    %c0_i32_1 = arith.constant 0 : i32
    return %c0_i32, %c0_i32_0 : i32, i32
  }
  func.func @transform_9(%arg0: i32) -> (i32, i32) {
    %c0_i32 = arith.constant 0 : i32
    %c0_i32_0 = arith.constant 0 : i32
    %c0_i32_1 = arith.constant 0 : i32
    return %c0_i32, %c0_i32_0 : i32, i32
  }
  func.func @transform_10(%arg0: i32) -> (i32, i32) {
    %c0_i32 = arith.constant 0 : i32
    %c0_i32_0 = arith.constant 0 : i32
    %c0_i32_1 = arith.constant 0 : i32
    return %c0_i32, %c0_i32_0 : i32, i32
  }
  func.func @transform_11(%arg0: i32) -> (i32, i32) {
    %c0_i32 = arith.constant 0 : i32
    %c0_i32_0 = arith.constant 0 : i32
    %c0_i32_1 = arith.constant 0 : i32
    return %c0_i32, %c0_i32_0 : i32, i32
  }
  func.func @transform_12(%arg0: i32) -> (i32, i32) {
    %c0_i32 = arith.constant 0 : i32
    %c0_i32_0 = arith.constant 0 : i32
    %c0_i32_1 = arith.constant 0 : i32
    return %c0_i32, %c0_i32_0 : i32, i32
  }
  func.func @transform_13(%arg0: i32) -> (i32, i32) {
    %c0_i32 = arith.constant 0 : i32
    %c0_i32_0 = arith.constant 0 : i32
    %c0_i32_1 = arith.constant 0 : i32
    return %c0_i32, %c0_i32_0 : i32, i32
  }
  func.func @transform_14(%arg0: i32) -> (i32, i32) {
    %c0_i32 = arith.constant 0 : i32
    %c0_i32_0 = arith.constant 0 : i32
    %c0_i32_1 = arith.constant 0 : i32
    return %c0_i32, %c0_i32_0 : i32, i32
  }
  func.func @transform_15(%arg0: i32) -> (i32, i32) {
    %c0_i32 = arith.constant 0 : i32
    %c0_i32_0 = arith.constant 0 : i32
    %c0_i32_1 = arith.constant 0 : i32
    return %c0_i32, %c0_i32_0 : i32, i32
  }
  func.func @transform_16(%arg0: i32) -> (i32, i32) {
    %c0_i32 = arith.constant 0 : i32
    %c0_i32_0 = arith.constant 0 : i32
    %c0_i32_1 = arith.constant 0 : i32
    return %c0_i32, %c0_i32_0 : i32, i32
  }
  func.func @transform_17(%arg0: i32) -> (i32, i32) {
    %c0_i32 = arith.constant 0 : i32
    %c0_i32_0 = arith.constant 0 : i32
    %c0_i32_1 = arith.constant 0 : i32
    return %c0_i32, %c0_i32_0 : i32, i32
  }
  func.func @transform_18(%arg0: i32) -> (i32, i32) {
    %c0_i32 = arith.constant 0 : i32
    %c0_i32_0 = arith.constant 0 : i32
    %c0_i32_1 = arith.constant 0 : i32
    return %c0_i32, %c0_i32_0 : i32, i32
  }
  func.func @transform_19(%arg0: i32) -> (i32, i32) {
    %c0_i32 = arith.constant 0 : i32
    %c0_i32_0 = arith.constant 0 : i32
    return %arg0, %c0_i32 : i32, i32
  }
}

</mosaic_0001>

<llo_original>
// kernel: tpu_custom_call.1
$region0: #{tpu_custom_call.1}
  #allocation0 [shape = 'u32[]', space=smem, size = 0x4, offset = 0x4, fixed_abs, tag = 'smem constant byte address 0x4 - core index']
  #allocation1 [shape = 'u32[144,128]{1,0:T(1,128)}', space=vmem, size = 0x12000, scoped, tag = 'internal scratch']
  %s0 = inlined_call_operand.hbm [shape: bf16[8,32], index: 0, kind: input, shape index: {}]
  %s1 = inlined_call_operand.hbm [shape: bf16[32,256], index: 1, kind: input, shape index: {}]
  %s2 = inlined_call_operand.hbm [shape: f32[1,256], index: 2, kind: input, shape index: {}]
  %s3 = inlined_call_operand.hbm [shape: bf16[256,256], index: 3, kind: input, shape index: {}]
  %s4 = inlined_call_operand.hbm [shape: f32[1,256], index: 4, kind: input, shape index: {}]
  %s5 = inlined_call_operand.hbm [shape: bf16[256,256], index: 5, kind: input, shape index: {}]
  %s6 = inlined_call_operand.hbm [shape: f32[1,256], index: 6, kind: input, shape index: {}]
  %s7 = inlined_call_operand.hbm [shape: bf16[256,256], index: 7, kind: input, shape index: {}]
  %s8 = inlined_call_operand.hbm [shape: f32[1,256], index: 8, kind: input, shape index: {}]
  %s9 = inlined_call_operand.hbm [shape: bf16[128,128], index: 9, kind: input, shape index: {}]
  %s10 = inlined_call_operand.hbm [shape: f32[1,128], index: 10, kind: input, shape index: {}]
  %s11 = inlined_call_operand.hbm [shape: bf16[128,256], index: 11, kind: input, shape index: {}]
  %s12 = inlined_call_operand.hbm [shape: f32[1,256], index: 12, kind: input, shape index: {}]
  %s13 = inlined_call_operand.hbm [shape: bf16[128,128], index: 13, kind: input, shape index: {}]
  %s14 = inlined_call_operand.hbm [shape: f32[1,128], index: 14, kind: input, shape index: {}]
  %s15 = inlined_call_operand.hbm [shape: bf16[128,128], index: 15, kind: input, shape index: {}]
  %s16 = inlined_call_operand.hbm [shape: f32[1,128], index: 16, kind: input, shape index: {}]
  %s17 = inlined_call_operand.vmem [shape: bf16[128,128], index: 17, kind: input, shape index: {}]
  %s18 = inlined_call_operand.vmem [shape: f32[1,128], index: 18, kind: input, shape index: {}]
  %s19 = inlined_call_operand.hbm [shape: f32[8,128], index: 19, kind: output, shape index: {}]
  %s20 = sld [smem:[#allocation0]]
  $region154: #{tpu_custom_call.1} parent=0
    _
  %s22 = ssub.s32 1, %s20
  %s23 = scalar_select 0, %s22, %s20
  $region1: #{tpu_custom_call.1} parent=0
    #allocation2 [shape = 'u8[2048]{0}', space=vmem, size = 0x800, scoped, tag = 'input window, operand 0, single buffered']
    #allocation3 [shape = 's32[1]{0}', space=sflag, size = 0x4, scoped, tag = 'scoped memory for tpu_custom_call.1']
    #allocation4 [shape = 's32[1]{0}', space=sflag, size = 0x4, scoped, tag = 'scoped memory for tpu_custom_call.1']
    #allocation5 [shape = 'u8[16384]{0}', space=vmem, size = 0x4000, scoped, tag = 'input window, operand 1, single buffered']
    #allocation6 [shape = 's32[1]{0}', space=sflag, size = 0x4, scoped, tag = 'scoped memory for tpu_custom_call.1']
    #allocation7 [shape = 'u8[1024]{0}', space=vmem, size = 0x400, scoped, tag = 'input window, operand 2, single buffered']
    #allocation8 [shape = 'u8[131072]{0}', space=vmem, size = 0x20000, scoped, tag = 'input window, operand 3, single buffered']
    #allocation9 [shape = 's32[1]{0}', space=sflag, size = 0x4, scoped, tag = 'scoped memory for tpu_custom_call.1']
    #allocation10 [shape = 'u8[1024]{0}', space=vmem, size = 0x400, scoped, tag = 'input window, operand 4, single buffered']
    #allocation11 [shape = 'u8[131072]{0}', space=vmem, size = 0x20000, scoped, tag = 'input window, operand 5, single buffered']
    #allocation12 [shape = 's32[1]{0}', space=sflag, size = 0x4, scoped, tag = 'scoped memory for tpu_custom_call.1']
    #allocation13 [shape = 'u8[1024]{0}', space=vmem, size = 0x400, scoped, tag = 'input window, operand 6, single buffered']
    #allocation14 [shape = 'u8[131072]{0}', space=vmem, size = 0x20000, scoped, tag = 'input window, operand 7, single buffered']
    #allocation15 [shape = 's32[1]{0}', space=sflag, size = 0x4, scoped, tag = 'scoped memory for tpu_custom_call.1']
    #allocation16 [shape = 'u8[1024]{0}', space=vmem, size = 0x400, scoped, tag = 'input window, operand 8, single buffered']
    #allocation17 [shape = 'u8[32768]{0}', space=vmem, size = 0x8000, scoped, tag = 'input window, operand 9, single buffered']
    #allocation18 [shape = 's32[1]{0}', space=sflag, size = 0x4, scoped, tag = 'scoped memory for tpu_custom_call.1']
    #allocation19 [shape = 'u8[512]{0}', space=vmem, size = 0x400, scoped, tag = 'input window, operand 10, single buffered']
    #allocation20 [shape = 'u8[65536]{0}', space=vmem, size = 0x10000, scoped, tag = 'input window, operand 11, single buffered']
    #allocation21 [shape = 's32[1]{0}', space=sflag, size = 0x4, scoped, tag = 'scoped memory for tpu_custom_call.1']
    #allocation22 [shape = 'u8[1024]{0}', space=vmem, size = 0x400, scoped, tag = 'input window, operand 12, single buffered']
    #allocation23 [shape = 'u8[32768]{0}', space=vmem, size = 0x8000, scoped, tag = 'input window, operand 13, single buffered']
    #allocation24 [shape = 's32[1]{0}', space=sflag, size = 0x4, scoped, tag = 'scoped memory for tpu_custom_call.1']
    #allocation25 [shape = 'u8[512]{0}', space=vmem, size = 0x400, scoped, tag = 'input window, operand 14, single buffered']
    #allocation26 [shape = 'u8[32768]{0}', space=vmem, size = 0x8000, scoped, tag = 'input window, operand 15, single buffered']
    #allocation27 [shape = 's32[1]{0}', space=sflag, size = 0x4, scoped, tag = 'scoped memory for tpu_custom_call.1']
    #allocation28 [shape = 'u8[512]{0}', space=vmem, size = 0x400, scoped, tag = 'input window, operand 16, single buffered']
    #allocation29 [shape = 'u8[4096]{0}', space=vmem, size = 0x1000, scoped, tag = 'output window, operand 0, single buffered']
    %24 = vsyncpa [#allocation3], 0
    %25 = vsyncpa [#allocation6], 0
    %26 = vsyncpa [#allocation9], 0
    %27 = vsyncpa [#allocation12], 0
    %28 = vsyncpa [#allocation15], 0
    %29 = vsyncpa [#allocation18], 0
    %30 = vsyncpa [#allocation21], 0
    %31 = vsyncpa [#allocation24], 0
    %32 = vsyncpa [#allocation27], 0
    %33 = vsyncpa [#allocation4], 0
    // Predicated region
    $region2: #{tpu_custom_call.1} parent=1 // pred_check
      _
    $region3: #{tpu_custom_call.1} parent=1 // pred_check_branch
      %35 = sbr.rel (0) target = $region5
    $region4: #{tpu_custom_call.1} parent=1 // pred_region
      %s37 = ssub.s32 64, 64
      %38 = vsyncadd [#allocation3], %s37
      %s40 = sshll.u32 [#allocation2], 4
      %s41 = int_to_ptr.vmem [resolvable:$true] %s40
      %43 = dma.hbm_to_vmem [thread:$0]  %s0, 64, %s41, [#allocation3]
    $region5: #{tpu_custom_call.1} parent=1 // pred_fallthru
      _
    // Predicated region
    $region6: #{tpu_custom_call.1} parent=1 // pred_check
      _
    $region7: #{tpu_custom_call.1} parent=1 // pred_check_branch
      %45 = sbr.rel (0) target = $region9
    $region8: #{tpu_custom_call.1} parent=1 // pred_region
      %s47 = ssub.s32 512, 512
      %48 = vsyncadd [#allocation6], %s47
      %s49 = sshll.u32 [#allocation5], 4
      %s50 = int_to_ptr.vmem [resolvable:$true] %s49
      %55 = dma.hbm_to_vmem [thread:$0]  %s1, 512, %s50, [#allocation6], 128, 128, 8
    $region9: #{tpu_custom_call.1} parent=1 // pred_fallthru
      _
    // Predicated region
    $region10: #{tpu_custom_call.1} parent=1 // pred_check
      _
    $region11: #{tpu_custom_call.1} parent=1 // pred_check_branch
      %57 = sbr.rel (0) target = $region13
    $region12: #{tpu_custom_call.1} parent=1 // pred_region
      %s59 = ssub.s32 32, 32
      %60 = vsyncadd [#allocation6], %s59
      %s62 = sshll.u32 [#allocation7], 4
      %s63 = int_to_ptr.vmem [resolvable:$true] %s62
      %65 = dma.hbm_to_vmem [thread:$0]  %s2, 32, %s63, [#allocation6]
    $region13: #{tpu_custom_call.1} parent=1 // pred_fallthru
      _
    // Predicated region
    $region14: #{tpu_custom_call.1} parent=1 // pred_check
      _
    $region15: #{tpu_custom_call.1} parent=1 // pred_check_branch
      %67 = sbr.rel (0) target = $region17
    $region16: #{tpu_custom_call.1} parent=1 // pred_region
      %s69 = ssub.s32 4096, 4096
      %70 = vsyncadd [#allocation9], %s69
      %s71 = sshll.u32 [#allocation8], 4
      %s72 = int_to_ptr.vmem [resolvable:$true] %s71
      %77 = dma.hbm_to_vmem [thread:$0]  %s3, 4096, %s72, [#allocation9], 128, 128, 8
    $region17: #{tpu_custom_call.1} parent=1 // pred_fallthru
      _
    // Predicated region
    $region18: #{tpu_custom_call.1} parent=1 // pred_check
      _
    $region19: #{tpu_custom_call.1} parent=1 // pred_check_branch
      %79 = sbr.rel (0) target = $region21
    $region20: #{tpu_custom_call.1} parent=1 // pred_region
      %s81 = ssub.s32 32, 32
      %82 = vsyncadd [#allocation9], %s81
      %s84 = sshll.u32 [#allocation10], 4
      %s85 = int_to_ptr.vmem [resolvable:$true] %s84
      %87 = dma.hbm_to_vmem [thread:$0]  %s4, 32, %s85, [#allocation9]
    $region21: #{tpu_custom_call.1} parent=1 // pred_fallthru
      _
    // Predicated region
    $region22: #{tpu_custom_call.1} parent=1 // pred_check
      _
    $region23: #{tpu_custom_call.1} parent=1 // pred_check_branch
      %89 = sbr.rel (0) target = $region25
    $region24: #{tpu_custom_call.1} parent=1 // pred_region
      %s91 = ssub.s32 4096, 4096
      %92 = vsyncadd [#allocation12], %s91
      %s93 = sshll.u32 [#allocation11], 4
      %s94 = int_to_ptr.vmem [resolvable:$true] %s93
      %99 = dma.hbm_to_vmem [thread:$0]  %s5, 4096, %s94, [#allocation12], 128, 128, 8
    $region25: #{tpu_custom_call.1} parent=1 // pred_fallthru
      _
    // Predicated region
    $region26: #{tpu_custom_call.1} parent=1 // pred_check
      _
    $region27: #{tpu_custom_call.1} parent=1 // pred_check_branch
      %101 = sbr.rel (0) target = $region29
    $region28: #{tpu_custom_call.1} parent=1 // pred_region
      %s103 = ssub.s32 32, 32
      %104 = vsyncadd [#allocation12], %s103
      %s106 = sshll.u32 [#allocation13], 4
      %s107 = int_to_ptr.vmem [resolvable:$true] %s106
      %109 = dma.hbm_to_vmem [thread:$0]  %s6, 32, %s107, [#allocation12]
    $region29: #{tpu_custom_call.1} parent=1 // pred_fallthru
      _
    // Predicated region
    $region30: #{tpu_custom_call.1} parent=1 // pred_check
      _
    $region31: #{tpu_custom_call.1} parent=1 // pred_check_branch
      %111 = sbr.rel (0) target = $region33
    $region32: #{tpu_custom_call.1} parent=1 // pred_region
      %s113 = ssub.s32 4096, 4096
      %114 = vsyncadd [#allocation15], %s113
      %s115 = sshll.u32 [#allocation14], 4
      %s116 = int_to_ptr.vmem [resolvable:$true] %s115
      %121 = dma.hbm_to_vmem [thread:$0]  %s7, 4096, %s116, [#allocation15], 128, 128, 8
    $region33: #{tpu_custom_call.1} parent=1 // pred_fallthru
      _
    // Predicated region
    $region34: #{tpu_custom_call.1} parent=1 // pred_check
      _
    $region35: #{tpu_custom_call.1} parent=1 // pred_check_branch
      %123 = sbr.rel (0) target = $region37
    $region36: #{tpu_custom_call.1} parent=1 // pred_region
      %s125 = ssub.s32 32, 32
      %126 = vsyncadd [#allocation15], %s125
      %s128 = sshll.u32 [#allocation16], 4
      %s129 = int_to_ptr.vmem [resolvable:$true] %s128
      %131 = dma.hbm_to_vmem [thread:$0]  %s8, 32, %s129, [#allocation15]
    $region37: #{tpu_custom_call.1} parent=1 // pred_fallthru
      _
    // Predicated region
    $region38: #{tpu_custom_call.1} parent=1 // pred_check
      _
    $region39: #{tpu_custom_call.1} parent=1 // pred_check_branch
      %133 = sbr.rel (0) target = $region41
    $region40: #{tpu_custom_call.1} parent=1 // pred_region
      %s135 = ssub.s32 1024, 1024
      %136 = vsyncadd [#allocation18], %s135
      %s137 = sshll.u32 [#allocation17], 4
      %s138 = int_to_ptr.vmem [resolvable:$true] %s137
      %143 = dma.hbm_to_vmem [thread:$0]  %s9, 1024, %s138, [#allocation18], 64, 64, 4
    $region41: #{tpu_custom_call.1} parent=1 // pred_fallthru
      _
    // Predicated region
    $region42: #{tpu_custom_call.1} parent=1 // pred_check
      _
    $region43: #{tpu_custom_call.1} parent=1 // pred_check_branch
      %145 = sbr.rel (0) target = $region45
    $region44: #{tpu_custom_call.1} parent=1 // pred_region
      %s147 = ssub.s32 16, 16
      %148 = vsyncadd [#allocation18], %s147
      %s150 = sshll.u32 [#allocation19], 4
      %s151 = int_to_ptr.vmem [resolvable:$true] %s150
      %153 = dma.hbm_to_vmem [thread:$0]  %s10, 16, %s151, [#allocation18]
    $region45: #{tpu_custom_call.1} parent=1 // pred_fallthru
      _
    // Predicated region
    $region46: #{tpu_custom_call.1} parent=1 // pred_check
      _
    $region47: #{tpu_custom_call.1} parent=1 // pred_check_branch
      %155 = sbr.rel (0) target = $region49
    $region48: #{tpu_custom_call.1} parent=1 // pred_region
      %s157 = ssub.s32 2048, 2048
      %158 = vsyncadd [#allocation21], %s157
      %s159 = sshll.u32 [#allocation20], 4
      %s160 = int_to_ptr.vmem [resolvable:$true] %s159
      %165 = dma.hbm_to_vmem [thread:$0]  %s11, 2048, %s160, [#allocation21], 128, 128, 8
    $region49: #{tpu_custom_call.1} parent=1 // pred_fallthru
      _
    // Predicated region
    $region50: #{tpu_custom_call.1} parent=1 // pred_check
      _
    $region51: #{tpu_custom_call.1} parent=1 // pred_check_branch
      %167 = sbr.rel (0) target = $region53
    $region52: #{tpu_custom_call.1} parent=1 // pred_region
      %s169 = ssub.s32 32, 32
      %170 = vsyncadd [#allocation21], %s169
      %s172 = sshll.u32 [#allocation22], 4
      %s173 = int_to_ptr.vmem [resolvable:$true] %s172
      %175 = dma.hbm_to_vmem [thread:$0]  %s12, 32, %s173, [#allocation21]
    $region53: #{tpu_custom_call.1} parent=1 // pred_fallthru
      _
    // Predicated region
    $region54: #{tpu_custom_call.1} parent=1 // pred_check
      _
    $region55: #{tpu_custom_call.1} parent=1 // pred_check_branch
      %177 = sbr.rel (0) target = $region57
    $region56: #{tpu_custom_call.1} parent=1 // pred_region
      %s179 = ssub.s32 1024, 1024
      %180 = vsyncadd [#allocation24], %s179
      %s181 = sshll.u32 [#allocation23], 4
      %s182 = int_to_ptr.vmem [resolvable:$true] %s181
      %187 = dma.hbm_to_vmem [thread:$0]  %s13, 1024, %s182, [#allocation24], 64, 64, 4
    $region57: #{tpu_custom_call.1} parent=1 // pred_fallthru
      _
    // Predicated region
    $region58: #{tpu_custom_call.1} parent=1 // pred_check
      _
    $region59: #{tpu_custom_call.1} parent=1 // pred_check_branch
      %189 = sbr.rel (0) target = $region61
    $region60: #{tpu_custom_call.1} parent=1 // pred_region
      %s191 = ssub.s32 16, 16
      %192 = vsyncadd [#allocation24], %s191
      %s194 = sshll.u32 [#allocation25], 4
      %s195 = int_to_ptr.vmem [resolvable:$true] %s194
      %197 = dma.hbm_to_vmem [thread:$0]  %s14, 16, %s195, [#allocation24]
    $region61: #{tpu_custom_call.1} parent=1 // pred_fallthru
      _
    // Predicated region
    $region62: #{tpu_custom_call.1} parent=1 // pred_check
      _
    $region63: #{tpu_custom_call.1} parent=1 // pred_check_branch
      %199 = sbr.rel (0) target = $region65
    $region64: #{tpu_custom_call.1} parent=1 // pred_region
      %s201 = ssub.s32 1024, 1024
      %202 = vsyncadd [#allocation27], %s201
      %s203 = sshll.u32 [#allocation26], 4
      %s204 = int_to_ptr.vmem [resolvable:$true] %s203
      %209 = dma.hbm_to_vmem [thread:$0]  %s15, 1024, %s204, [#allocation27], 64, 64, 4
    $region65: #{tpu_custom_call.1} parent=1 // pred_fallthru
      _
    // Predicated region
    $region66: #{tpu_custom_call.1} parent=1 // pred_check
      _
    $region67: #{tpu_custom_call.1} parent=1 // pred_check_branch
      %211 = sbr.rel (0) target = $region69
    $region68: #{tpu_custom_call.1} parent=1 // pred_region
      %s213 = ssub.s32 16, 16
      %214 = vsyncadd [#allocation27], %s213
      %s216 = sshll.u32 [#allocation28], 4
      %s217 = int_to_ptr.vmem [resolvable:$true] %s216
      %219 = dma.hbm_to_vmem [thread:$0]  %s16, 16, %s217, [#allocation27]
    $region69: #{tpu_custom_call.1} parent=1 // pred_fallthru
      _
    // Predicated region
    $region70: #{tpu_custom_call.1} parent=1 // pred_check
      _
    $region71: #{tpu_custom_call.1} parent=1 // pred_check_branch
      %221 = sbr.rel (0) target = $region73
    $region72: #{tpu_custom_call.1} parent=1 // pred_region
      _
    $region73: #{tpu_custom_call.1} parent=1 // pred_fallthru
      _
    // Predicated region
    $region74: #{tpu_custom_call.1} parent=1 // pred_check
      _
    $region75: #{tpu_custom_call.1} parent=1 // pred_check_branch
      %223 = sbr.rel (0) target = $region77
    $region76: #{tpu_custom_call.1} parent=1 // pred_region
      _
    $region77: #{tpu_custom_call.1} parent=1 // pred_fallthru
      _
    // Predicated region
    $region78: #{tpu_custom_call.1} parent=1 // pred_check
      _
    $region79: #{tpu_custom_call.1} parent=1 // pred_check_branch
      %225 = sbr.rel (0) target = $region81
    $region80: #{tpu_custom_call.1} parent=1 // pred_region
      %226 = dma.done [#allocation3], 64
    $region81: #{tpu_custom_call.1} parent=1 // pred_fallthru
      _
    // Predicated region
    $region82: #{tpu_custom_call.1} parent=1 // pred_check
      _
    $region83: #{tpu_custom_call.1} parent=1 // pred_check_branch
      %228 = sbr.rel (0) target = $region85
    $region84: #{tpu_custom_call.1} parent=1 // pred_region
      %229 = dma.done [#allocation6], 512
    $region85: #{tpu_custom_call.1} parent=1 // pred_fallthru
      _
    // Predicated region
    $region86: #{tpu_custom_call.1} parent=1 // pred_check
      _
    $region87: #{tpu_custom_call.1} parent=1 // pred_check_branch
      %231 = sbr.rel (0) target = $region89
    $region88: #{tpu_custom_call.1} parent=1 // pred_region
      %232 = dma.done [#allocation6], 32
    $region89: #{tpu_custom_call.1} parent=1 // pred_fallthru
      _
    // Predicated region
    $region90: #{tpu_custom_call.1} parent=1 // pred_check
      _
    $region91: #{tpu_custom_call.1} parent=1 // pred_check_branch
      %234 = sbr.rel (0) target = $region93
    $region92: #{tpu_custom_call.1} parent=1 // pred_region
      %235 = dma.done [#allocation9], 4096
    $region93: #{tpu_custom_call.1} parent=1 // pred_fallthru
      _
    // Predicated region
    $region94: #{tpu_custom_call.1} parent=1 // pred_check
      _
    $region95: #{tpu_custom_call.1} parent=1 // pred_check_branch
      %237 = sbr.rel (0) target = $region97
    $region96: #{tpu_custom_call.1} parent=1 // pred_region
      %238 = dma.done [#allocation9], 32
    $region97: #{tpu_custom_call.1} parent=1 // pred_fallthru
      _
    // Predicated region
    $region98: #{tpu_custom_call.1} parent=1 // pred_check
      _
    $region99: #{tpu_custom_call.1} parent=1 // pred_check_branch
      %240 = sbr.rel (0) target = $region101
    $region100: #{tpu_custom_call.1} parent=1 // pred_region
      %241 = dma.done [#allocation12], 4096
    $region101: #{tpu_custom_call.1} parent=1 // pred_fallthru
      _
    // Predicated region
    $region102: #{tpu_custom_call.1} parent=1 // pred_check
      _
    $region103: #{tpu_custom_call.1} parent=1 // pred_check_branch
      %243 = sbr.rel (0) target = $region105
    $region104: #{tpu_custom_call.1} parent=1 // pred_region
      %244 = dma.done [#allocation12], 32
    $region105: #{tpu_custom_call.1} parent=1 // pred_fallthru
      _
    // Predicated region
    $region106: #{tpu_custom_call.1} parent=1 // pred_check
      _
    $region107: #{tpu_custom_call.1} parent=1 // pred_check_branch
      %246 = sbr.rel (0) target = $region109
    $region108: #{tpu_custom_call.1} parent=1 // pred_region
      %247 = dma.done [#allocation15], 4096
    $region109: #{tpu_custom_call.1} parent=1 // pred_fallthru
      _
    // Predicated region
    $region110: #{tpu_custom_call.1} parent=1 // pred_check
      _
    $region111: #{tpu_custom_call.1} parent=1 // pred_check_branch
      %249 = sbr.rel (0) target = $region113
    $region112: #{tpu_custom_call.1} parent=1 // pred_region
      %250 = dma.done [#allocation15], 32
    $region113: #{tpu_custom_call.1} parent=1 // pred_fallthru
      _
    // Predicated region
    $region114: #{tpu_custom_call.1} parent=1 // pred_check
      _
    $region115: #{tpu_custom_call.1} parent=1 // pred_check_branch
      %252 = sbr.rel (0) target = $region117
    $region116: #{tpu_custom_call.1} parent=1 // pred_region
      %253 = dma.done [#allocation18], 1024
    $region117: #{tpu_custom_call.1} parent=1 // pred_fallthru
      _
    // Predicated region
    $region118: #{tpu_custom_call.1} parent=1 // pred_check
      _
    $region119: #{tpu_custom_call.1} parent=1 // pred_check_branch
      %255 = sbr.rel (0) target = $region121
    $region120: #{tpu_custom_call.1} parent=1 // pred_region
      %256 = dma.done [#allocation18], 16
    $region121: #{tpu_custom_call.1} parent=1 // pred_fallthru
      _
    // Predicated region
    $region122: #{tpu_custom_call.1} parent=1 // pred_check
      _
    $region123: #{tpu_custom_call.1} parent=1 // pred_check_branch
      %258 = sbr.rel (0) target = $region125
    $region124: #{tpu_custom_call.1} parent=1 // pred_region
      %259 = dma.done [#allocation21], 2048
    $region125: #{tpu_custom_call.1} parent=1 // pred_fallthru
      _
    // Predicated region
    $region126: #{tpu_custom_call.1} parent=1 // pred_check
      _
    $region127: #{tpu_custom_call.1} parent=1 // pred_check_branch
      %261 = sbr.rel (0) target = $region129
    $region128: #{tpu_custom_call.1} parent=1 // pred_region
      %262 = dma.done [#allocation21], 32
    $region129: #{tpu_custom_call.1} parent=1 // pred_fallthru
      _
    // Predicated region
    $region130: #{tpu_custom_call.1} parent=1 // pred_check
      _
    $region131: #{tpu_custom_call.1} parent=1 // pred_check_branch
      %264 = sbr.rel (0) target = $region133
    $region132: #{tpu_custom_call.1} parent=1 // pred_region
      %265 = dma.done [#allocation24], 1024
    $region133: #{tpu_custom_call.1} parent=1 // pred_fallthru
      _
    // Predicated region
    $region134: #{tpu_custom_call.1} parent=1 // pred_check
      _
    $region135: #{tpu_custom_call.1} parent=1 // pred_check_branch
      %267 = sbr.rel (0) target = $region137
    $region136: #{tpu_custom_call.1} parent=1 // pred_region
      %268 = dma.done [#allocation24], 16
    $region137: #{tpu_custom_call.1} parent=1 // pred_fallthru
      _
    // Predicated region
    $region138: #{tpu_custom_call.1} parent=1 // pred_check
      _
    $region139: #{tpu_custom_call.1} parent=1 // pred_check_branch
      %270 = sbr.rel (0) target = $region141
    $region140: #{tpu_custom_call.1} parent=1 // pred_region
      %271 = dma.done [#allocation27], 1024
    $region141: #{tpu_custom_call.1} parent=1 // pred_fallthru
      _
    // Predicated region
    $region142: #{tpu_custom_call.1} parent=1 // pred_check
      _
    $region143: #{tpu_custom_call.1} parent=1 // pred_check_branch
      %273 = sbr.rel (0) target = $region145
    $region144: #{tpu_custom_call.1} parent=1 // pred_region
      %274 = dma.done [#allocation27], 16
    $region145: #{tpu_custom_call.1} parent=1 // pred_fallthru
      _
    %v276 = vld [vmem:[#allocation2] sm:$0xf]
    %v277 = vld [vmem:[#allocation5] sm:$0xff]
    %v278 = vld [vmem:[#allocation5 + $0x8] sm:$0xff]
    %v279 = vld [vmem:[#allocation5 + $0x10] sm:$0xff]
    %v280 = vld [vmem:[#allocation5 + $0x18] sm:$0xff]
    %v281 = vld [vmem:[#allocation7] sm:$0x3]
    %v283 = vlaneseq
    %v284 = vshrl.u32 %v283, 7
    %v285 = vsub.s32 0, %v284
    %v286 = vrot.slane %v281, %v285
    %v287 = vlaneseq
    %v288 = vshrl.u32 %v287, 7
    %v289 = vsub.s32 1, %v288
    %v290 = vrot.slane %v281, %v289
    %v297 = vunpack.c.l.b16 %v277
    %v298 = vunpack.c.h.b16 %v277
    %v299 = vunpack.c.l.b16 %v278
    %v300 = vunpack.c.h.b16 %v278
    %v301 = vunpack.c.l.b16 %v279
    %v302 = vunpack.c.h.b16 %v279
    %v303 = vunpack.c.l.b16 %v280
    %v304 = vunpack.c.h.b16 %v280
    %v305 = vpack.c.b16 %v299, %v297
    %v306 = vpack.c.b16 %v300, %v298
    %v307 = vpack.c.b16 %v303, %v301
    %v308 = vpack.c.b16 %v304, %v302
    %vm313 = vcmask 261120
    %v315 = vsel %vm313, %v276, 0
    %317 = vmatprep.subr.bf16.mxu0 %v306
    %318 = vmatpush1.bf16.msra.mxu0 %v305
    %319 = vmatprep.subr.bf16.mxu0 %v308
    %320 = vmatpush1.bf16.msra.mxu0 %v307
    %321 = vmatprep.subr.bf16.mxu0 0
    %322 = vmatpush1.bf16.msra.mxu0 0
    %323 = vmatprep.subr.bf16.mxu0 0
    %324 = vmatpush1.bf16.msra.mxu0 0
    %325 = vmatprep.subr.bf16.mxu0 0
    %326 = vmatpush1.bf16.msra.mxu0 0
    %327 = vmatprep.subr.bf16.mxu0 0
    %328 = vmatpush1.bf16.msra.mxu0 0
    %329 = vmatprep.subr.bf16.mxu0 0
    %330 = vmatpush1.bf16.msra.mxu0 0
    %331 = vmatprep.subr.bf16.mxu0 0
    %332 = vmatpush1.bf16.msra.mxu0 0
    %333 = vmatprep.subr.bf16.mxu0 0
    %334 = vmatpush1.bf16.msra.mxu0 0
    %335 = vmatprep.subr.bf16.mxu0 0
    %336 = vmatpush1.bf16.msra.mxu0 0
    %337 = vmatprep.subr.bf16.mxu0 0
    %338 = vmatpush1.bf16.msra.mxu0 0
    %339 = vmatprep.subr.bf16.mxu0 0
    %340 = vmatpush1.bf16.msra.mxu0 0
    %341 = vmatprep.subr.bf16.mxu0 0
    %342 = vmatpush1.bf16.msra.mxu0 0
    %343 = vmatprep.subr.bf16.mxu0 0
    %344 = vmatpush1.bf16.msra.mxu0 0
    %345 = vmatprep.subr.bf16.mxu0 0
    %346 = vmatpush1.bf16.msra.mxu0 0
    %347 = vmatprep.subr.bf16.mxu0 0
    %348 = vmatpush1.bf16.msra.mxu0 0
    %349 = vmatprep.mubr.bf16.mxu0 0
    %350 = vmatmul.mubr.bf16.gmra.mrb[0].mxu0 %v315
    %v351 = vpop.f32.mrb[0].mxu0
    %v352 = vadd.f32 %v286, %v351
    %v353 = vpop.f32.mrb[0].mxu0
    %v354 = vadd.f32 %v290, %v353
    %v355 = vpop.f32.mrb[0].mxu0
    %v356 = vpop.f32.mrb[0].mxu0
    %357 = vdwg.mxu0
    %v358 = vmax.f32 %v352, 0.0
    %v359 = vmax.f32 %v354, 0.0
    %v360 = vpack.c.bf16 %v358, %v358
    %v361 = vpack.c.bf16 %v359, %v359
    %v362 = vld [vmem:[#allocation8] sm:$0xff]
    %v363 = vld [vmem:[#allocation8 + $0x8] sm:$0xff]
    %v364 = vld [vmem:[#allocation8 + $0x10] sm:$0xff]
    %v365 = vld [vmem:[#allocation8 + $0x18] sm:$0xff]
    %v366 = vld [vmem:[#allocation8 + $0x20] sm:$0xff]
    %v367 = vld [vmem:[#allocation8 + $0x28] sm:$0xff]
    %v368 = vld [vmem:[#allocation8 + $0x30] sm:$0xff]
    %v369 = vld [vmem:[#allocation8 + $0x38] sm:$0xff]
    %v370 = vld [vmem:[#allocation8 + $0x40] sm:$0xff]
    %v371 = vld [vmem:[#allocation8 + $0x48] sm:$0xff]
    %v372 = vld [vmem:[#allocation8 + $0x50] sm:$0xff]
    %v373 = vld [vmem:[#allocation8 + $0x58] sm:$0xff]
    %v374 = vld [vmem:[#allocation8 + $0x60] sm:$0xff]
    %v375 = vld [vmem:[#allocation8 + $0x68] sm:$0xff]
    %v376 = vld [vmem:[#allocation8 + $0x70] sm:$0xff]
    %v377 = vld [vmem:[#allocation8 + $0x78] sm:$0xff]
    %v378 = vld [vmem:[#allocation8 + $0x80] sm:$0xff]
    %v379 = vld [vmem:[#allocation8 + $0x88] sm:$0xff]
    %v380 = vld [vmem:[#allocation8 + $0x90] sm:$0xff]
    %v381 = vld [vmem:[#allocation8 + $0x98] sm:$0xff]
    %v382 = vld [vmem:[#allocation8 + $0xa0] sm:$0xff]
    %v383 = vld [vmem:[#allocation8 + $0xa8] sm:$0xff]
    %v384 = vld [vmem:[#allocation8 + $0xb0] sm:$0xff]
    %v385 = vld [vmem:[#allocation8 + $0xb8] sm:$0xff]
    %v386 = vld [vmem:[#allocation8 + $0xc0] sm:$0xff]
    %v387 = vld [vmem:[#allocation8 + $0xc8] sm:$0xff]
    %v388 = vld [vmem:[#allocation8 + $0xd0] sm:$0xff]
    %v389 = vld [vmem:[#allocation8 + $0xd8] sm:$0xff]
    %v390 = vld [vmem:[#allocation8 + $0xe0] sm:$0xff]
    %v391 = vld [vmem:[#allocation8 + $0xe8] sm:$0xff]
    %v392 = vld [vmem:[#allocation8 + $0xf0] sm:$0xff]
    %v393 = vld [vmem:[#allocation8 + $0xf8] sm:$0xff]
    %v394 = vld [vmem:[#allocation10] sm:$0x3]
    %v396 = vlaneseq
    %v397 = vshrl.u32 %v396, 7
    %v398 = vsub.s32 0, %v397
    %v399 = vrot.slane %v394, %v398
    %v400 = vlaneseq
    %v401 = vshrl.u32 %v400, 7
    %v402 = vsub.s32 1, %v401
    %v403 = vrot.slane %v394, %v402
    %v438 = vunpack.c.l.b16 %v362
    %v439 = vunpack.c.h.b16 %v362
    %v440 = vunpack.c.l.b16 %v363
    %v441 = vunpack.c.h.b16 %v363
    %v442 = vunpack.c.l.b16 %v364
    %v443 = vunpack.c.h.b16 %v364
    %v444 = vunpack.c.l.b16 %v365
    %v445 = vunpack.c.h.b16 %v365
    %v446 = vunpack.c.l.b16 %v366
    %v447 = vunpack.c.h.b16 %v366
    %v448 = vunpack.c.l.b16 %v367
    %v449 = vunpack.c.h.b16 %v367
    %v450 = vunpack.c.l.b16 %v368
    %v451 = vunpack.c.h.b16 %v368
    %v452 = vunpack.c.l.b16 %v369
    %v453 = vunpack.c.h.b16 %v369
    %v454 = vunpack.c.l.b16 %v370
    %v455 = vunpack.c.h.b16 %v370
    %v456 = vunpack.c.l.b16 %v371
    %v457 = vunpack.c.h.b16 %v371
    %v458 = vunpack.c.l.b16 %v372
    %v459 = vunpack.c.h.b16 %v372
    %v460 = vunpack.c.l.b16 %v373
    %v461 = vunpack.c.h.b16 %v373
    %v462 = vunpack.c.l.b16 %v374
    %v463 = vunpack.c.h.b16 %v374
    %v464 = vunpack.c.l.b16 %v375
    %v465 = vunpack.c.h.b16 %v375
    %v466 = vunpack.c.l.b16 %v376
    %v467 = vunpack.c.h.b16 %v376
    %v468 = vunpack.c.l.b16 %v377
    %v469 = vunpack.c.h.b16 %v377
    %v470 = vunpack.c.l.b16 %v378
    %v471 = vunpack.c.h.b16 %v378
    %v472 = vunpack.c.l.b16 %v379
    %v473 = vunpack.c.h.b16 %v379
    %v474 = vunpack.c.l.b16 %v380
    %v475 = vunpack.c.h.b16 %v380
    %v476 = vunpack.c.l.b16 %v381
    %v477 = vunpack.c.h.b16 %v381
    %v478 = vunpack.c.l.b16 %v382
    %v479 = vunpack.c.h.b16 %v382
    %v480 = vunpack.c.l.b16 %v383
    %v481 = vunpack.c.h.b16 %v383
    %v482 = vunpack.c.l.b16 %v384
    %v483 = vunpack.c.h.b16 %v384
    %v484 = vunpack.c.l.b16 %v385
    %v485 = vunpack.c.h.b16 %v385
    %v486 = vunpack.c.l.b16 %v386
    %v487 = vunpack.c.h.b16 %v386
    %v488 = vunpack.c.l.b16 %v387
    %v489 = vunpack.c.h.b16 %v387
    %v490 = vunpack.c.l.b16 %v388
    %v491 = vunpack.c.h.b16 %v388
    %v492 = vunpack.c.l.b16 %v389
    %v493 = vunpack.c.h.b16 %v389
    %v494 = vunpack.c.l.b16 %v390
    %v495 = vunpack.c.h.b16 %v390
    %v496 = vunpack.c.l.b16 %v391
    %v497 = vunpack.c.h.b16 %v391
    %v498 = vunpack.c.l.b16 %v392
    %v499 = vunpack.c.h.b16 %v392
    %v500 = vunpack.c.l.b16 %v393
    %v501 = vunpack.c.h.b16 %v393
    %v502 = vpack.c.b16 %v440, %v438
    %v503 = vpack.c.b16 %v441, %v439
    %v504 = vpack.c.b16 %v444, %v442
    %v505 = vpack.c.b16 %v445, %v443
    %v506 = vpack.c.b16 %v448, %v446
    %v507 = vpack.c.b16 %v449, %v447
    %v508 = vpack.c.b16 %v452, %v450
    %v509 = vpack.c.b16 %v453, %v451
    %v510 = vpack.c.b16 %v456, %v454
    %v511 = vpack.c.b16 %v457, %v455
    %v512 = vpack.c.b16 %v460, %v458
    %v513 = vpack.c.b16 %v461, %v459
    %v514 = vpack.c.b16 %v464, %v462
    %v515 = vpack.c.b16 %v465, %v463
    %v516 = vpack.c.b16 %v468, %v466
    %v517 = vpack.c.b16 %v469, %v467
    %v518 = vpack.c.b16 %v472, %v470
    %v519 = vpack.c.b16 %v473, %v471
    %v520 = vpack.c.b16 %v476, %v474
    %v521 = vpack.c.b16 %v477, %v475
    %v522 = vpack.c.b16 %v480, %v478
    %v523 = vpack.c.b16 %v481, %v479
    %v524 = vpack.c.b16 %v484, %v482
    %v525 = vpack.c.b16 %v485, %v483
    %v526 = vpack.c.b16 %v488, %v486
    %v527 = vpack.c.b16 %v489, %v487
    %v528 = vpack.c.b16 %v492, %v490
    %v529 = vpack.c.b16 %v493, %v491
    %v530 = vpack.c.b16 %v496, %v494
    %v531 = vpack.c.b16 %v497, %v495
    %v532 = vpack.c.b16 %v500, %v498
    %v533 = vpack.c.b16 %v501, %v499
    %566 = vmatprep.subr.bf16.mxu0 %v503
    %567 = vmatpush1.bf16.msra.mxu0 %v502
    %568 = vmatprep.subr.bf16.mxu0 %v505
    %569 = vmatpush1.bf16.msra.mxu0 %v504
    %570 = vmatprep.subr.bf16.mxu0 %v507
    %571 = vmatpush1.bf16.msra.mxu0 %v506
    %572 = vmatprep.subr.bf16.mxu0 %v509
    %573 = vmatpush1.bf16.msra.mxu0 %v508
    %574 = vmatprep.subr.bf16.mxu0 %v511
    %575 = vmatpush1.bf16.msra.mxu0 %v510
    %576 = vmatprep.subr.bf16.mxu0 %v513
    %577 = vmatpush1.bf16.msra.mxu0 %v512
    %578 = vmatprep.subr.bf16.mxu0 %v515
    %579 = vmatpush1.bf16.msra.mxu0 %v514
    %580 = vmatprep.subr.bf16.mxu0 %v517
    %581 = vmatpush1.bf16.msra.mxu0 %v516
    %582 = vmatprep.subr.bf16.mxu0 %v519
    %583 = vmatpush1.bf16.msra.mxu0 %v518
    %584 = vmatprep.subr.bf16.mxu0 %v521
    %585 = vmatpush1.bf16.msra.mxu0 %v520
    %586 = vmatprep.subr.bf16.mxu0 %v523
    %587 = vmatpush1.bf16.msra.mxu0 %v522
    %588 = vmatprep.subr.bf16.mxu0 %v525
    %589 = vmatpush1.bf16.msra.mxu0 %v524
    %590 = vmatprep.subr.bf16.mxu0 %v527
    %591 = vmatpush1.bf16.msra.mxu0 %v526
    %592 = vmatprep.subr.bf16.mxu0 %v529
    %593 = vmatpush1.bf16.msra.mxu0 %v528
    %594 = vmatprep.subr.bf16.mxu0 %v531
    %595 = vmatpush1.bf16.msra.mxu0 %v530
    %596 = vmatprep.subr.bf16.mxu0 %v533
    %597 = vmatpush1.bf16.msra.mxu0 %v532
    %598 = vmatprep.mubr.bf16.mxu0 %v361
    %599 = vmatmul.mubr.bf16.gmra.mrb[0].mxu0 %v360
    %v600 = vpop.f32.mrb[0].mxu0
    %v601 = vadd.f32 %v399, %v600
    %v602 = vpop.f32.mrb[0].mxu0
    %v603 = vadd.f32 %v403, %v602
    %v604 = vpop.f32.mrb[0].mxu0
    %v605 = vpop.f32.mrb[0].mxu0
    %606 = vdwg.mxu0
    %v607 = vmax.f32 %v601, 0.0
    %v608 = vmax.f32 %v603, 0.0
    %v609 = vpack.c.bf16 %v607, %v607
    %v610 = vpack.c.bf16 %v608, %v608
    %v611 = vld [vmem:[#allocation11] sm:$0xff]
    %v612 = vld [vmem:[#allocation11 + $0x8] sm:$0xff]
    %v613 = vld [vmem:[#allocation11 + $0x10] sm:$0xff]
    %v614 = vld [vmem:[#allocation11 + $0x18] sm:$0xff]
    %v615 = vld [vmem:[#allocation11 + $0x20] sm:$0xff]
    %v616 = vld [vmem:[#allocation11 + $0x28] sm:$0xff]
    %v617 = vld [vmem:[#allocation11 + $0x30] sm:$0xff]
    %v618 = vld [vmem:[#allocation11 + $0x38] sm:$0xff]
    %v619 = vld [vmem:[#allocation11 + $0x40] sm:$0xff]
    %v620 = vld [vmem:[#allocation11 + $0x48] sm:$0xff]
    %v621 = vld [vmem:[#allocation11 + $0x50] sm:$0xff]
    %v622 = vld [vmem:[#allocation11 + $0x58] sm:$0xff]
    %v623 = vld [vmem:[#allocation11 + $0x60] sm:$0xff]
    %v624 = vld [vmem:[#allocation11 + $0x68] sm:$0xff]
    %v625 = vld [vmem:[#allocation11 + $0x70] sm:$0xff]
    %v626 = vld [vmem:[#allocation11 + $0x78] sm:$0xff]
    %v627 = vld [vmem:[#allocation11 + $0x80] sm:$0xff]
    %v628 = vld [vmem:[#allocation11 + $0x88] sm:$0xff]
    %v629 = vld [vmem:[#allocation11 + $0x90] sm:$0xff]
    %v630 = vld [vmem:[#allocation11 + $0x98] sm:$0xff]
    %v631 = vld [vmem:[#allocation11 + $0xa0] sm:$0xff]
    %v632 = vld [vmem:[#allocation11 + $0xa8] sm:$0xff]
    %v633 = vld [vmem:[#allocation11 + $0xb0] sm:$0xff]
    %v634 = vld [vmem:[#allocation11 + $0xb8] sm:$0xff]
    %v635 = vld [vmem:[#allocation11 + $0xc0] sm:$0xff]
    %v636 = vld [vmem:[#allocation11 + $0xc8] sm:$0xff]
    %v637 = vld [vmem:[#allocation11 + $0xd0] sm:$0xff]
    %v638 = vld [vmem:[#allocation11 + $0xd8] sm:$0xff]
    %v639 = vld [vmem:[#allocation11 + $0xe0] sm:$0xff]
    %v640 = vld [vmem:[#allocation11 + $0xe8] sm:$0xff]
    %v641 = vld [vmem:[#allocation11 + $0xf0] sm:$0xff]
    %v642 = vld [vmem:[#allocation11 + $0xf8] sm:$0xff]
    %v643 = vld [vmem:[#allocation13] sm:$0x3]
    %v645 = vlaneseq
    %v646 = vshrl.u32 %v645, 7
    %v647 = vsub.s32 0, %v646
    %v648 = vrot.slane %v643, %v647
    %v649 = vlaneseq
    %v650 = vshrl.u32 %v649, 7
    %v651 = vsub.s32 1, %v650
    %v652 = vrot.slane %v643, %v651
    %v687 = vunpack.c.l.b16 %v611
    %v688 = vunpack.c.h.b16 %v611
    %v689 = vunpack.c.l.b16 %v612
    %v690 = vunpack.c.h.b16 %v612
    %v691 = vunpack.c.l.b16 %v613
    %v692 = vunpack.c.h.b16 %v613
    %v693 = vunpack.c.l.b16 %v614
    %v694 = vunpack.c.h.b16 %v614
    %v695 = vunpack.c.l.b16 %v615
    %v696 = vunpack.c.h.b16 %v615
    %v697 = vunpack.c.l.b16 %v616
    %v698 = vunpack.c.h.b16 %v616
    %v699 = vunpack.c.l.b16 %v617
    %v700 = vunpack.c.h.b16 %v617
    %v701 = vunpack.c.l.b16 %v618
    %v702 = vunpack.c.h.b16 %v618
    %v703 = vunpack.c.l.b16 %v619
    %v704 = vunpack.c.h.b16 %v619
    %v705 = vunpack.c.l.b16 %v620
    %v706 = vunpack.c.h.b16 %v620
    %v707 = vunpack.c.l.b16 %v621
    %v708 = vunpack.c.h.b16 %v621
    %v709 = vunpack.c.l.b16 %v622
    %v710 = vunpack.c.h.b16 %v622
    %v711 = vunpack.c.l.b16 %v623
    %v712 = vunpack.c.h.b16 %v623
    %v713 = vunpack.c.l.b16 %v624
    %v714 = vunpack.c.h.b16 %v624
    %v715 = vunpack.c.l.b16 %v625
    %v716 = vunpack.c.h.b16 %v625
    %v717 = vunpack.c.l.b16 %v626
    %v718 = vunpack.c.h.b16 %v626
    %v719 = vunpack.c.l.b16 %v627
    %v720 = vunpack.c.h.b16 %v627
    %v721 = vunpack.c.l.b16 %v628
    %v722 = vunpack.c.h.b16 %v628
    %v723 = vunpack.c.l.b16 %v629
    %v724 = vunpack.c.h.b16 %v629
    %v725 = vunpack.c.l.b16 %v630
    %v726 = vunpack.c.h.b16 %v630
    %v727 = vunpack.c.l.b16 %v631
    %v728 = vunpack.c.h.b16 %v631
    %v729 = vunpack.c.l.b16 %v632
    %v730 = vunpack.c.h.b16 %v632
    %v731 = vunpack.c.l.b16 %v633
    %v732 = vunpack.c.h.b16 %v633
    %v733 = vunpack.c.l.b16 %v634
    %v734 = vunpack.c.h.b16 %v634
    %v735 = vunpack.c.l.b16 %v635
    %v736 = vunpack.c.h.b16 %v635
    %v737 = vunpack.c.l.b16 %v636
    %v738 = vunpack.c.h.b16 %v636
    %v739 = vunpack.c.l.b16 %v637
    %v740 = vunpack.c.h.b16 %v637
    %v741 = vunpack.c.l.b16 %v638
    %v742 = vunpack.c.h.b16 %v638
    %v743 = vunpack.c.l.b16 %v639
    %v744 = vunpack.c.h.b16 %v639
    %v745 = vunpack.c.l.b16 %v640
    %v746 = vunpack.c.h.b16 %v640
    %v747 = vunpack.c.l.b16 %v641
    %v748 = vunpack.c.h.b16 %v641
    %v749 = vunpack.c.l.b16 %v642
    %v750 = vunpack.c.h.b16 %v642
    %v751 = vpack.c.b16 %v689, %v687
    %v752 = vpack.c.b16 %v690, %v688
    %v753 = vpack.c.b16 %v693, %v691
    %v754 = vpack.c.b16 %v694, %v692
    %v755 = vpack.c.b16 %v697, %v695
    %v756 = vpack.c.b16 %v698, %v696
    %v757 = vpack.c.b16 %v701, %v699
    %v758 = vpack.c.b16 %v702, %v700
    %v759 = vpack.c.b16 %v705, %v703
    %v760 = vpack.c.b16 %v706, %v704
    %v761 = vpack.c.b16 %v709, %v707
    %v762 = vpack.c.b16 %v710, %v708
    %v763 = vpack.c.b16 %v713, %v711
    %v764 = vpack.c.b16 %v714, %v712
    %v765 = vpack.c.b16 %v717, %v715
    %v766 = vpack.c.b16 %v718, %v716
    %v767 = vpack.c.b16 %v721, %v719
    %v768 = vpack.c.b16 %v722, %v720
    %v769 = vpack.c.b16 %v725, %v723
    %v770 = vpack.c.b16 %v726, %v724
    %v771 = vpack.c.b16 %v729, %v727
    %v772 = vpack.c.b16 %v730, %v728
    %v773 = vpack.c.b16 %v733, %v731
    %v774 = vpack.c.b16 %v734, %v732
    %v775 = vpack.c.b16 %v737, %v735
    %v776 = vpack.c.b16 %v738, %v736
    %v777 = vpack.c.b16 %v741, %v739
    %v778 = vpack.c.b16 %v742, %v740
    %v779 = vpack.c.b16 %v745, %v743
    %v780 = vpack.c.b16 %v746, %v744
    %v781 = vpack.c.b16 %v749, %v747
    %v782 = vpack.c.b16 %v750, %v748
    %815 = vmatprep.subr.bf16.mxu0 %v752
    %816 = vmatpush1.bf16.msra.mxu0 %v751
    %817 = vmatprep.subr.bf16.mxu0 %v754
    %818 = vmatpush1.bf16.msra.mxu0 %v753
    %819 = vmatprep.subr.bf16.mxu0 %v756
    %820 = vmatpush1.bf16.msra.mxu0 %v755
    %821 = vmatprep.subr.bf16.mxu0 %v758
    %822 = vmatpush1.bf16.msra.mxu0 %v757
    %823 = vmatprep.subr.bf16.mxu0 %v760
    %824 = vmatpush1.bf16.msra.mxu0 %v759
    %825 = vmatprep.subr.bf16.mxu0 %v762
    %826 = vmatpush1.bf16.msra.mxu0 %v761
    %827 = vmatprep.subr.bf16.mxu0 %v764
    %828 = vmatpush1.bf16.msra.mxu0 %v763
    %829 = vmatprep.subr.bf16.mxu0 %v766
    %830 = vmatpush1.bf16.msra.mxu0 %v765
    %831 = vmatprep.subr.bf16.mxu0 %v768
    %832 = vmatpush1.bf16.msra.mxu0 %v767
    %833 = vmatprep.subr.bf16.mxu0 %v770
    %834 = vmatpush1.bf16.msra.mxu0 %v769
    %835 = vmatprep.subr.bf16.mxu0 %v772
    %836 = vmatpush1.bf16.msra.mxu0 %v771
    %837 = vmatprep.subr.bf16.mxu0 %v774
    %838 = vmatpush1.bf16.msra.mxu0 %v773
    %839 = vmatprep.subr.bf16.mxu0 %v776
    %840 = vmatpush1.bf16.msra.mxu0 %v775
    %841 = vmatprep.subr.bf16.mxu0 %v778
    %842 = vmatpush1.bf16.msra.mxu0 %v777
    %843 = vmatprep.subr.bf16.mxu0 %v780
    %844 = vmatpush1.bf16.msra.mxu0 %v779
    %845 = vmatprep.subr.bf16.mxu0 %v782
    %846 = vmatpush1.bf16.msra.mxu0 %v781
    %847 = vmatprep.mubr.bf16.mxu0 %v610
    %848 = vmatmul.mubr.bf16.gmra.mrb[0].mxu0 %v609
    %v849 = vpop.f32.mrb[0].mxu0
    %v850 = vadd.f32 %v648, %v849
    %v851 = vpop.f32.mrb[0].mxu0
    %v852 = vadd.f32 %v652, %v851
    %v853 = vpop.f32.mrb[0].mxu0
    %v854 = vpop.f32.mrb[0].mxu0
    %855 = vdwg.mxu0
    %v856 = vadd.f32 %v850, %v358
    %v857 = vadd.f32 %v852, %v359
    %v858 = vmax.f32 %v856, 0.0
    %v859 = vmax.f32 %v857, 0.0
    %v860 = vpack.c.bf16 %v858, %v858
    %v861 = vpack.c.bf16 %v859, %v859
    %v862 = vld [vmem:[#allocation14] sm:$0xff]
    %v863 = vld [vmem:[#allocation14 + $0x8] sm:$0xff]
    %v864 = vld [vmem:[#allocation14 + $0x10] sm:$0xff]
    %v865 = vld [vmem:[#allocation14 + $0x18] sm:$0xff]
    %v866 = vld [vmem:[#allocation14 + $0x20] sm:$0xff]
    %v867 = vld [vmem:[#allocation14 + $0x28] sm:$0xff]
    %v868 = vld [vmem:[#allocation14 + $0x30] sm:$0xff]
    %v869 = vld [vmem:[#allocation14 + $0x38] sm:$0xff]
    %v870 = vld [vmem:[#allocation14 + $0x40] sm:$0xff]
    %v871 = vld [vmem:[#allocation14 + $0x48] sm:$0xff]
    %v872 = vld [vmem:[#allocation14 + $0x50] sm:$0xff]
    %v873 = vld [vmem:[#allocation14 + $0x58] sm:$0xff]
    %v874 = vld [vmem:[#allocation14 + $0x60] sm:$0xff]
    %v875 = vld [vmem:[#allocation14 + $0x68] sm:$0xff]
    %v876 = vld [vmem:[#allocation14 + $0x70] sm:$0xff]
    %v877 = vld [vmem:[#allocation14 + $0x78] sm:$0xff]
    %v878 = vld [vmem:[#allocation14 + $0x80] sm:$0xff]
    %v879 = vld [vmem:[#allocation14 + $0x88] sm:$0xff]
    %v880 = vld [vmem:[#allocation14 + $0x90] sm:$0xff]
    %v881 = vld [vmem:[#allocation14 + $0x98] sm:$0xff]
    %v882 = vld [vmem:[#allocation14 + $0xa0] sm:$0xff]
    %v883 = vld [vmem:[#allocation14 + $0xa8] sm:$0xff]
    %v884 = vld [vmem:[#allocation14 + $0xb0] sm:$0xff]
    %v885 = vld [vmem:[#allocation14 + $0xb8] sm:$0xff]
    %v886 = vld [vmem:[#allocation14 + $0xc0] sm:$0xff]
    %v887 = vld [vmem:[#allocation14 + $0xc8] sm:$0xff]
    %v888 = vld [vmem:[#allocation14 + $0xd0] sm:$0xff]
    %v889 = vld [vmem:[#allocation14 + $0xd8] sm:$0xff]
    %v890 = vld [vmem:[#allocation14 + $0xe0] sm:$0xff]
    %v891 = vld [vmem:[#allocation14 + $0xe8] sm:$0xff]
    %v892 = vld [vmem:[#allocation14 + $0xf0] sm:$0xff]
    %v893 = vld [vmem:[#allocation14 + $0xf8] sm:$0xff]
    %v894 = vld [vmem:[#allocation16] sm:$0x3]
    %v896 = vlaneseq
    %v897 = vshrl.u32 %v896, 7
    %v898 = vsub.s32 0, %v897
    %v899 = vrot.slane %v894, %v898
    %v900 = vlaneseq
    %v901 = vshrl.u32 %v900, 7
    %v902 = vsub.s32 1, %v901
    %v903 = vrot.slane %v894, %v902
    %v938 = vunpack.c.l.b16 %v862
    %v939 = vunpack.c.h.b16 %v862
    %v940 = vunpack.c.l.b16 %v863
    %v941 = vunpack.c.h.b16 %v863
    %v942 = vunpack.c.l.b16 %v864
    %v943 = vunpack.c.h.b16 %v864
    %v944 = vunpack.c.l.b16 %v865
    %v945 = vunpack.c.h.b16 %v865
    %v946 = vunpack.c.l.b16 %v866
    %v947 = vunpack.c.h.b16 %v866
    %v948 = vunpack.c.l.b16 %v867
    %v949 = vunpack.c.h.b16 %v867
    %v950 = vunpack.c.l.b16 %v868
    %v951 = vunpack.c.h.b16 %v868
    %v952 = vunpack.c.l.b16 %v869
    %v953 = vunpack.c.h.b16 %v869
    %v954 = vunpack.c.l.b16 %v870
    %v955 = vunpack.c.h.b16 %v870
    %v956 = vunpack.c.l.b16 %v871
    %v957 = vunpack.c.h.b16 %v871
    %v958 = vunpack.c.l.b16 %v872
    %v959 = vunpack.c.h.b16 %v872
    %v960 = vunpack.c.l.b16 %v873
    %v961 = vunpack.c.h.b16 %v873
    %v962 = vunpack.c.l.b16 %v874
    %v963 = vunpack.c.h.b16 %v874
    %v964 = vunpack.c.l.b16 %v875
    %v965 = vunpack.c.h.b16 %v875
    %v966 = vunpack.c.l.b16 %v876
    %v967 = vunpack.c.h.b16 %v876
    %v968 = vunpack.c.l.b16 %v877
    %v969 = vunpack.c.h.b16 %v877
    %v970 = vunpack.c.l.b16 %v878
    %v971 = vunpack.c.h.b16 %v878
    %v972 = vunpack.c.l.b16 %v879
    %v973 = vunpack.c.h.b16 %v879
    %v974 = vunpack.c.l.b16 %v880
    %v975 = vunpack.c.h.b16 %v880
    %v976 = vunpack.c.l.b16 %v881
    %v977 = vunpack.c.h.b16 %v881
    %v978 = vunpack.c.l.b16 %v882
    %v979 = vunpack.c.h.b16 %v882
    %v980 = vunpack.c.l.b16 %v883
    %v981 = vunpack.c.h.b16 %v883
    %v982 = vunpack.c.l.b16 %v884
    %v983 = vunpack.c.h.b16 %v884
    %v984 = vunpack.c.l.b16 %v885
    %v985 = vunpack.c.h.b16 %v885
    %v986 = vunpack.c.l.b16 %v886
    %v987 = vunpack.c.h.b16 %v886
    %v988 = vunpack.c.l.b16 %v887
    %v989 = vunpack.c.h.b16 %v887
    %v990 = vunpack.c.l.b16 %v888
    %v991 = vunpack.c.h.b16 %v888
    %v992 = vunpack.c.l.b16 %v889
    %v993 = vunpack.c.h.b16 %v889
    %v994 = vunpack.c.l.b16 %v890
    %v995 = vunpack.c.h.b16 %v890
    %v996 = vunpack.c.l.b16 %v891
    %v997 = vunpack.c.h.b16 %v891
    %v998 = vunpack.c.l.b16 %v892
    %v999 = vunpack.c.h.b16 %v892
    %v1000 = vunpack.c.l.b16 %v893
    %v1001 = vunpack.c.h.b16 %v893
    %v1002 = vpack.c.b16 %v940, %v938
    %v1003 = vpack.c.b16 %v941, %v939
    %v1004 = vpack.c.b16 %v944, %v942
    %v1005 = vpack.c.b16 %v945, %v943
    %v1006 = vpack.c.b16 %v948, %v946
    %v1007 = vpack.c.b16 %v949, %v947
    %v1008 = vpack.c.b16 %v952, %v950
    %v1009 = vpack.c.b16 %v953, %v951
    %v1010 = vpack.c.b16 %v956, %v954
    %v1011 = vpack.c.b16 %v957, %v955
    %v1012 = vpack.c.b16 %v960, %v958
    %v1013 = vpack.c.b16 %v961, %v959
    %v1014 = vpack.c.b16 %v964, %v962
    %v1015 = vpack.c.b16 %v965, %v963
    %v1016 = vpack.c.b16 %v968, %v966
    %v1017 = vpack.c.b16 %v969, %v967
    %v1018 = vpack.c.b16 %v972, %v970
    %v1019 = vpack.c.b16 %v973, %v971
    %v1020 = vpack.c.b16 %v976, %v974
    %v1021 = vpack.c.b16 %v977, %v975
    %v1022 = vpack.c.b16 %v980, %v978
    %v1023 = vpack.c.b16 %v981, %v979
    %v1024 = vpack.c.b16 %v984, %v982
    %v1025 = vpack.c.b16 %v985, %v983
    %v1026 = vpack.c.b16 %v988, %v986
    %v1027 = vpack.c.b16 %v989, %v987
    %v1028 = vpack.c.b16 %v992, %v990
    %v1029 = vpack.c.b16 %v993, %v991
    %v1030 = vpack.c.b16 %v996, %v994
    %v1031 = vpack.c.b16 %v997, %v995
    %v1032 = vpack.c.b16 %v1000, %v998
    %v1033 = vpack.c.b16 %v1001, %v999
    %1066 = vmatprep.subr.bf16.mxu0 %v1003
    %1067 = vmatpush1.bf16.msra.mxu0 %v1002
    %1068 = vmatprep.subr.bf16.mxu0 %v1005
    %1069 = vmatpush1.bf16.msra.mxu0 %v1004
    %1070 = vmatprep.subr.bf16.mxu0 %v1007
    %1071 = vmatpush1.bf16.msra.mxu0 %v1006
    %1072 = vmatprep.subr.bf16.mxu0 %v1009
    %1073 = vmatpush1.bf16.msra.mxu0 %v1008
    %1074 = vmatprep.subr.bf16.mxu0 %v1011
    %1075 = vmatpush1.bf16.msra.mxu0 %v1010
    %1076 = vmatprep.subr.bf16.mxu0 %v1013
    %1077 = vmatpush1.bf16.msra.mxu0 %v1012
    %1078 = vmatprep.subr.bf16.mxu0 %v1015
    %1079 = vmatpush1.bf16.msra.mxu0 %v1014
    %1080 = vmatprep.subr.bf16.mxu0 %v1017
    %1081 = vmatpush1.bf16.msra.mxu0 %v1016
    %1082 = vmatprep.subr.bf16.mxu0 %v1019
    %1083 = vmatpush1.bf16.msra.mxu0 %v1018
    %1084 = vmatprep.subr.bf16.mxu0 %v1021
    %1085 = vmatpush1.bf16.msra.mxu0 %v1020
    %1086 = vmatprep.subr.bf16.mxu0 %v1023
    %1087 = vmatpush1.bf16.msra.mxu0 %v1022
    %1088 = vmatprep.subr.bf16.mxu0 %v1025
    %1089 = vmatpush1.bf16.msra.mxu0 %v1024
    %1090 = vmatprep.subr.bf16.mxu0 %v1027
    %1091 = vmatpush1.bf16.msra.mxu0 %v1026
    %1092 = vmatprep.subr.bf16.mxu0 %v1029
    %1093 = vmatpush1.bf16.msra.mxu0 %v1028
    %1094 = vmatprep.subr.bf16.mxu0 %v1031
    %1095 = vmatpush1.bf16.msra.mxu0 %v1030
    %1096 = vmatprep.subr.bf16.mxu0 %v1033
    %1097 = vmatpush1.bf16.msra.mxu0 %v1032
    %1098 = vmatprep.mubr.bf16.mxu0 %v861
    %1099 = vmatmul.mubr.bf16.gmra.mrb[0].mxu0 %v860
    %v1100 = vpop.f32.mrb[0].mxu0
    %v1101 = vadd.f32 %v899, %v1100
    %v1102 = vpop.f32.mrb[0].mxu0
    %v1103 = vadd.f32 %v903, %v1102
    %v1104 = vpop.f32.mrb[0].mxu0
    %v1105 = vpop.f32.mrb[0].mxu0
    %1106 = vdwg.mxu0
    %v1107 = vmax.f32 %v1101, 0.0
    %v1108 = vpack.c.bf16 %v1107, %v1107
    %v1109 = vld [vmem:[#allocation17] sm:$0xf]
    %v1110 = vld [vmem:[#allocation17 + $0x4] sm:$0xf]
    %v1111 = vld [vmem:[#allocation17 + $0x8] sm:$0xf]
    %v1112 = vld [vmem:[#allocation17 + $0xc] sm:$0xf]
    %v1113 = vld [vmem:[#allocation17 + $0x10] sm:$0xf]
    %v1114 = vld [vmem:[#allocation17 + $0x14] sm:$0xf]
    %v1115 = vld [vmem:[#allocation17 + $0x18] sm:$0xf]
    %v1116 = vld [vmem:[#allocation17 + $0x1c] sm:$0xf]
    %v1117 = vld [vmem:[#allocation17 + $0x20] sm:$0xf]
    %v1118 = vld [vmem:[#allocation17 + $0x24] sm:$0xf]
    %v1119 = vld [vmem:[#allocation17 + $0x28] sm:$0xf]
    %v1120 = vld [vmem:[#allocation17 + $0x2c] sm:$0xf]
    %v1121 = vld [vmem:[#allocation17 + $0x30] sm:$0xf]
    %v1122 = vld [vmem:[#allocation17 + $0x34] sm:$0xf]
    %v1123 = vld [vmem:[#allocation17 + $0x38] sm:$0xf]
    %v1124 = vld [vmem:[#allocation17 + $0x3c] sm:$0xf]
    %v1125 = vld [vmem:[#allocation19] sm:$0x1]
    %v1127 = vlaneseq
    %v1128 = vshrl.u32 %v1127, 7
    %v1129 = vsub.s32 0, %v1128
    %v1130 = vrot.slane %v1125, %v1129
    %v1148 = vunpack.c.l.b16 %v1109
    %v1149 = vunpack.c.l.b16 %v1110
    %v1150 = vunpack.c.l.b16 %v1111
    %v1151 = vunpack.c.l.b16 %v1112
    %v1152 = vunpack.c.l.b16 %v1113
    %v1153 = vunpack.c.l.b16 %v1114
    %v1154 = vunpack.c.l.b16 %v1115
    %v1155 = vunpack.c.l.b16 %v1116
    %v1156 = vunpack.c.l.b16 %v1117
    %v1157 = vunpack.c.l.b16 %v1118
    %v1158 = vunpack.c.l.b16 %v1119
    %v1159 = vunpack.c.l.b16 %v1120
    %v1160 = vunpack.c.l.b16 %v1121
    %v1161 = vunpack.c.l.b16 %v1122
    %v1162 = vunpack.c.l.b16 %v1123
    %v1163 = vunpack.c.l.b16 %v1124
    %v1164 = vpack.c.b16 %v1149, %v1148
    %v1165 = vpack.c.b16 %v1151, %v1150
    %v1166 = vpack.c.b16 %v1153, %v1152
    %v1167 = vpack.c.b16 %v1155, %v1154
    %v1168 = vpack.c.b16 %v1157, %v1156
    %v1169 = vpack.c.b16 %v1159, %v1158
    %v1170 = vpack.c.b16 %v1161, %v1160
    %v1171 = vpack.c.b16 %v1163, %v1162
    %1180 = vmatprep.subr.bf16.mxu0 0
    %1181 = vmatpush1.bf16.msra.mxu0 %v1164
    %1182 = vmatprep.subr.bf16.mxu0 0
    %1183 = vmatpush1.bf16.msra.mxu0 %v1165
    %1184 = vmatprep.subr.bf16.mxu0 0
    %1185 = vmatpush1.bf16.msra.mxu0 %v1166
    %1186 = vmatprep.subr.bf16.mxu0 0
    %1187 = vmatpush1.bf16.msra.mxu0 %v1167
    %1188 = vmatprep.subr.bf16.mxu0 0
    %1189 = vmatpush1.bf16.msra.mxu0 %v1168
    %1190 = vmatprep.subr.bf16.mxu0 0
    %1191 = vmatpush1.bf16.msra.mxu0 %v1169
    %1192 = vmatprep.subr.bf16.mxu0 0
    %1193 = vmatpush1.bf16.msra.mxu0 %v1170
    %1194 = vmatprep.subr.bf16.mxu0 0
    %1195 = vmatpush1.bf16.msra.mxu0 %v1171
    %1196 = vmatprep.subr.bf16.mxu0 0
    %1197 = vmatpush1.bf16.msra.mxu0 0
    %1198 = vmatprep.subr.bf16.mxu0 0
    %1199 = vmatpush1.bf16.msra.mxu0 0
    %1200 = vmatprep.subr.bf16.mxu0 0
    %1201 = vmatpush1.bf16.msra.mxu0 0
    %1202 = vmatprep.subr.bf16.mxu0 0
    %1203 = vmatpush1.bf16.msra.mxu0 0
    %1204 = vmatprep.subr.bf16.mxu0 0
    %1205 = vmatpush1.bf16.msra.mxu0 0
    %1206 = vmatprep.subr.bf16.mxu0 0
    %1207 = vmatpush1.bf16.msra.mxu0 0
    %1208 = vmatprep.subr.bf16.mxu0 0
    %1209 = vmatpush1.bf16.msra.mxu0 0
    %1210 = vmatprep.subr.bf16.mxu0 0
    %1211 = vmatpush1.bf16.msra.mxu0 0
    %1212 = vmatprep.mubr.bf16.mxu0 0
    %1213 = vmatmul.mubr.bf16.gmra.mrb[0].mxu0 %v1108
    %v1214 = vpop.f32.mrb[0].mxu0
    %v1215 = vadd.f32 %v1130, %v1214
    %v1216 = vpop.f32.mrb[0].mxu0
    %v1217 = vpop.f32.mrb[0].mxu0
    %v1218 = vpop.f32.mrb[0].mxu0
    %1219 = vdwg.mxu0
    %v1220 = vadd.f32 %v1215, %v1103
    %v1221 = vmax.f32 %v1220, 0.0
    %v1222 = vpack.c.bf16 %v1221, %v1221
    %v1223 = vld [vmem:[#allocation20] sm:$0xff]
    %v1224 = vld [vmem:[#allocation20 + $0x8] sm:$0xff]
    %v1225 = vld [vmem:[#allocation20 + $0x10] sm:$0xff]
    %v1226 = vld [vmem:[#allocation20 + $0x18] sm:$0xff]
    %v1227 = vld [vmem:[#allocation20 + $0x20] sm:$0xff]
    %v1228 = vld [vmem:[#allocation20 + $0x28] sm:$0xff]
    %v1229 = vld [vmem:[#allocation20 + $0x30] sm:$0xff]
    %v1230 = vld [vmem:[#allocation20 + $0x38] sm:$0xff]
    %v1231 = vld [vmem:[#allocation20 + $0x40] sm:$0xff]
    %v1232 = vld [vmem:[#allocation20 + $0x48] sm:$0xff]
    %v1233 = vld [vmem:[#allocation20 + $0x50] sm:$0xff]
    %v1234 = vld [vmem:[#allocation20 + $0x58] sm:$0xff]
    %v1235 = vld [vmem:[#allocation20 + $0x60] sm:$0xff]
    %v1236 = vld [vmem:[#allocation20 + $0x68] sm:$0xff]
    %v1237 = vld [vmem:[#allocation20 + $0x70] sm:$0xff]
    %v1238 = vld [vmem:[#allocation20 + $0x78] sm:$0xff]
    %v1239 = vld [vmem:[#allocation22] sm:$0x3]
    %v1241 = vlaneseq
    %v1242 = vshrl.u32 %v1241, 7
    %v1243 = vsub.s32 0, %v1242
    %v1244 = vrot.slane %v1239, %v1243
    %v1245 = vlaneseq
    %v1246 = vshrl.u32 %v1245, 7
    %v1247 = vsub.s32 1, %v1246
    %v1248 = vrot.slane %v1239, %v1247
    %v1267 = vunpack.c.l.b16 %v1223
    %v1268 = vunpack.c.h.b16 %v1223
    %v1269 = vunpack.c.l.b16 %v1224
    %v1270 = vunpack.c.h.b16 %v1224
    %v1271 = vunpack.c.l.b16 %v1225
    %v1272 = vunpack.c.h.b16 %v1225
    %v1273 = vunpack.c.l.b16 %v1226
    %v1274 = vunpack.c.h.b16 %v1226
    %v1275 = vunpack.c.l.b16 %v1227
    %v1276 = vunpack.c.h.b16 %v1227
    %v1277 = vunpack.c.l.b16 %v1228
    %v1278 = vunpack.c.h.b16 %v1228
    %v1279 = vunpack.c.l.b16 %v1229
    %v1280 = vunpack.c.h.b16 %v1229
    %v1281 = vunpack.c.l.b16 %v1230
    %v1282 = vunpack.c.h.b16 %v1230
    %v1283 = vunpack.c.l.b16 %v1231
    %v1284 = vunpack.c.h.b16 %v1231
    %v1285 = vunpack.c.l.b16 %v1232
    %v1286 = vunpack.c.h.b16 %v1232
    %v1287 = vunpack.c.l.b16 %v1233
    %v1288 = vunpack.c.h.b16 %v1233
    %v1289 = vunpack.c.l.b16 %v1234
    %v1290 = vunpack.c.h.b16 %v1234
    %v1291 = vunpack.c.l.b16 %v1235
    %v1292 = vunpack.c.h.b16 %v1235
    %v1293 = vunpack.c.l.b16 %v1236
    %v1294 = vunpack.c.h.b16 %v1236
    %v1295 = vunpack.c.l.b16 %v1237
    %v1296 = vunpack.c.h.b16 %v1237
    %v1297 = vunpack.c.l.b16 %v1238
    %v1298 = vunpack.c.h.b16 %v1238
    %v1299 = vpack.c.b16 %v1269, %v1267
    %v1300 = vpack.c.b16 %v1270, %v1268
    %v1301 = vpack.c.b16 %v1273, %v1271
    %v1302 = vpack.c.b16 %v1274, %v1272
    %v1303 = vpack.c.b16 %v1277, %v1275
    %v1304 = vpack.c.b16 %v1278, %v1276
    %v1305 = vpack.c.b16 %v1281, %v1279
    %v1306 = vpack.c.b16 %v1282, %v1280
    %v1307 = vpack.c.b16 %v1285, %v1283
    %v1308 = vpack.c.b16 %v1286, %v1284
    %v1309 = vpack.c.b16 %v1289, %v1287
    %v1310 = vpack.c.b16 %v1290, %v1288
    %v1311 = vpack.c.b16 %v1293, %v1291
    %v1312 = vpack.c.b16 %v1294, %v1292
    %v1313 = vpack.c.b16 %v1297, %v1295
    %v1314 = vpack.c.b16 %v1298, %v1296
    %1331 = vmatprep.subr.bf16.mxu0 %v1300
    %1332 = vmatpush1.bf16.msra.mxu0 %v1299
    %1333 = vmatprep.subr.bf16.mxu0 %v1302
    %1334 = vmatpush1.bf16.msra.mxu0 %v1301
    %1335 = vmatprep.subr.bf16.mxu0 %v1304
    %1336 = vmatpush1.bf16.msra.mxu0 %v1303
    %1337 = vmatprep.subr.bf16.mxu0 %v1306
    %1338 = vmatpush1.bf16.msra.mxu0 %v1305
    %1339 = vmatprep.subr.bf16.mxu0 %v1308
    %1340 = vmatpush1.bf16.msra.mxu0 %v1307
    %1341 = vmatprep.subr.bf16.mxu0 %v1310
    %1342 = vmatpush1.bf16.msra.mxu0 %v1309
    %1343 = vmatprep.subr.bf16.mxu0 %v1312
    %1344 = vmatpush1.bf16.msra.mxu0 %v1311
    %1345 = vmatprep.subr.bf16.mxu0 %v1314
    %1346 = vmatpush1.bf16.msra.mxu0 %v1313
    %1347 = vmatprep.subr.bf16.mxu0 0
    %1348 = vmatpush1.bf16.msra.mxu0 0
    %1349 = vmatprep.subr.bf16.mxu0 0
    %1350 = vmatpush1.bf16.msra.mxu0 0
    %1351 = vmatprep.subr.bf16.mxu0 0
    %1352 = vmatpush1.bf16.msra.mxu0 0
    %1353 = vmatprep.subr.bf16.mxu0 0
    %1354 = vmatpush1.bf16.msra.mxu0 0
    %1355 = vmatprep.subr.bf16.mxu0 0
    %1356 = vmatpush1.bf16.msra.mxu0 0
    %1357 = vmatprep.subr.bf16.mxu0 0
    %1358 = vmatpush1.bf16.msra.mxu0 0
    %1359 = vmatprep.subr.bf16.mxu0 0
    %1360 = vmatpush1.bf16.msra.mxu0 0
    %1361 = vmatprep.subr.bf16.mxu0 0
    %1362 = vmatpush1.bf16.msra.mxu0 0
    %1363 = vmatprep.mubr.bf16.mxu0 0
    %1364 = vmatmul.mubr.bf16.gmra.mrb[0].mxu0 %v1222
    %v1365 = vpop.f32.mrb[0].mxu0
    %v1366 = vadd.f32 %v1244, %v1365
    %v1367 = vpop.f32.mrb[0].mxu0
    %v1368 = vadd.f32 %v1248, %v1367
    %v1369 = vpop.f32.mrb[0].mxu0
    %v1370 = vpop.f32.mrb[0].mxu0
    %1371 = vdwg.mxu0
    %v1372 = vmax.f32 %v1366, 0.0
    %v1373 = vpack.c.bf16 %v1372, %v1372
    %v1374 = vld [vmem:[#allocation23] sm:$0xf]
    %v1375 = vld [vmem:[#allocation23 + $0x4] sm:$0xf]
    %v1376 = vld [vmem:[#allocation23 + $0x8] sm:$0xf]
    %v1377 = vld [vmem:[#allocation23 + $0xc] sm:$0xf]
    %v1378 = vld [vmem:[#allocation23 + $0x10] sm:$0xf]
    %v1379 = vld [vmem:[#allocation23 + $0x14] sm:$0xf]
    %v1380 = vld [vmem:[#allocation23 + $0x18] sm:$0xf]
    %v1381 = vld [vmem:[#allocation23 + $0x1c] sm:$0xf]
    %v1382 = vld [vmem:[#allocation23 + $0x20] sm:$0xf]
    %v1383 = vld [vmem:[#allocation23 + $0x24] sm:$0xf]
    %v1384 = vld [vmem:[#allocation23 + $0x28] sm:$0xf]
    %v1385 = vld [vmem:[#allocation23 + $0x2c] sm:$0xf]
    %v1386 = vld [vmem:[#allocation23 + $0x30] sm:$0xf]
    %v1387 = vld [vmem:[#allocation23 + $0x34] sm:$0xf]
    %v1388 = vld [vmem:[#allocation23 + $0x38] sm:$0xf]
    %v1389 = vld [vmem:[#allocation23 + $0x3c] sm:$0xf]
    %v1390 = vld [vmem:[#allocation25] sm:$0x1]
    %v1392 = vlaneseq
    %v1393 = vshrl.u32 %v1392, 7
    %v1394 = vsub.s32 0, %v1393
    %v1395 = vrot.slane %v1390, %v1394
    %v1413 = vunpack.c.l.b16 %v1374
    %v1414 = vunpack.c.l.b16 %v1375
    %v1415 = vunpack.c.l.b16 %v1376
    %v1416 = vunpack.c.l.b16 %v1377
    %v1417 = vunpack.c.l.b16 %v1378
    %v1418 = vunpack.c.l.b16 %v1379
    %v1419 = vunpack.c.l.b16 %v1380
    %v1420 = vunpack.c.l.b16 %v1381
    %v1421 = vunpack.c.l.b16 %v1382
    %v1422 = vunpack.c.l.b16 %v1383
    %v1423 = vunpack.c.l.b16 %v1384
    %v1424 = vunpack.c.l.b16 %v1385
    %v1425 = vunpack.c.l.b16 %v1386
    %v1426 = vunpack.c.l.b16 %v1387
    %v1427 = vunpack.c.l.b16 %v1388
    %v1428 = vunpack.c.l.b16 %v1389
    %v1429 = vpack.c.b16 %v1414, %v1413
    %v1430 = vpack.c.b16 %v1416, %v1415
    %v1431 = vpack.c.b16 %v1418, %v1417
    %v1432 = vpack.c.b16 %v1420, %v1419
    %v1433 = vpack.c.b16 %v1422, %v1421
    %v1434 = vpack.c.b16 %v1424, %v1423
    %v1435 = vpack.c.b16 %v1426, %v1425
    %v1436 = vpack.c.b16 %v1428, %v1427
    %1445 = vmatprep.subr.bf16.mxu0 0
    %1446 = vmatpush1.bf16.msra.mxu0 %v1429
    %1447 = vmatprep.subr.bf16.mxu0 0
    %1448 = vmatpush1.bf16.msra.mxu0 %v1430
    %1449 = vmatprep.subr.bf16.mxu0 0
    %1450 = vmatpush1.bf16.msra.mxu0 %v1431
    %1451 = vmatprep.subr.bf16.mxu0 0
    %1452 = vmatpush1.bf16.msra.mxu0 %v1432
    %1453 = vmatprep.subr.bf16.mxu0 0
    %1454 = vmatpush1.bf16.msra.mxu0 %v1433
    %1455 = vmatprep.subr.bf16.mxu0 0
    %1456 = vmatpush1.bf16.msra.mxu0 %v1434
    %1457 = vmatprep.subr.bf16.mxu0 0
    %1458 = vmatpush1.bf16.msra.mxu0 %v1435
    %1459 = vmatprep.subr.bf16.mxu0 0
    %1460 = vmatpush1.bf16.msra.mxu0 %v1436
    %1461 = vmatprep.subr.bf16.mxu0 0
    %1462 = vmatpush1.bf16.msra.mxu0 0
    %1463 = vmatprep.subr.bf16.mxu0 0
    %1464 = vmatpush1.bf16.msra.mxu0 0
    %1465 = vmatprep.subr.bf16.mxu0 0
    %1466 = vmatpush1.bf16.msra.mxu0 0
    %1467 = vmatprep.subr.bf16.mxu0 0
    %1468 = vmatpush1.bf16.msra.mxu0 0
    %1469 = vmatprep.subr.bf16.mxu0 0
    %1470 = vmatpush1.bf16.msra.mxu0 0
    %1471 = vmatprep.subr.bf16.mxu0 0
    %1472 = vmatpush1.bf16.msra.mxu0 0
    %1473 = vmatprep.subr.bf16.mxu0 0
    %1474 = vmatpush1.bf16.msra.mxu0 0
    %1475 = vmatprep.subr.bf16.mxu0 0
    %1476 = vmatpush1.bf16.msra.mxu0 0
    %1477 = vmatprep.mubr.bf16.mxu0 0
    %1478 = vmatmul.mubr.bf16.gmra.mrb[0].mxu0 %v1373
    %v1479 = vpop.f32.mrb[0].mxu0
    %v1480 = vadd.f32 %v1395, %v1479
    %v1481 = vpop.f32.mrb[0].mxu0
    %v1482 = vpop.f32.mrb[0].mxu0
    %v1483 = vpop.f32.mrb[0].mxu0
    %1484 = vdwg.mxu0
    %v1485 = vadd.f32 %v1480, %v1368
    %v1486 = vmax.f32 %v1485, 0.0
    %v1487 = vpack.c.bf16 %v1486, %v1486
    %v1488 = vld [vmem:[#allocation26] sm:$0xf]
    %v1489 = vld [vmem:[#allocation26 + $0x4] sm:$0xf]
    %v1490 = vld [vmem:[#allocation26 + $0x8] sm:$0xf]
    %v1491 = vld [vmem:[#allocation26 + $0xc] sm:$0xf]
    %v1492 = vld [vmem:[#allocation26 + $0x10] sm:$0xf]
    %v1493 = vld [vmem:[#allocation26 + $0x14] sm:$0xf]
    %v1494 = vld [vmem:[#allocation26 + $0x18] sm:$0xf]
    %v1495 = vld [vmem:[#allocation26 + $0x1c] sm:$0xf]
    %v1496 = vld [vmem:[#allocation26 + $0x20] sm:$0xf]
    %v1497 = vld [vmem:[#allocation26 + $0x24] sm:$0xf]
    %v1498 = vld [vmem:[#allocation26 + $0x28] sm:$0xf]
    %v1499 = vld [vmem:[#allocation26 + $0x2c] sm:$0xf]
    %v1500 = vld [vmem:[#allocation26 + $0x30] sm:$0xf]
    %v1501 = vld [vmem:[#allocation26 + $0x34] sm:$0xf]
    %v1502 = vld [vmem:[#allocation26 + $0x38] sm:$0xf]
    %v1503 = vld [vmem:[#allocation26 + $0x3c] sm:$0xf]
    %v1504 = vld [vmem:[#allocation28] sm:$0x1]
    %v1506 = vlaneseq
    %v1507 = vshrl.u32 %v1506, 7
    %v1508 = vsub.s32 0, %v1507
    %v1509 = vrot.slane %v1504, %v1508
    %v1527 = vunpack.c.l.b16 %v1488
    %v1528 = vunpack.c.l.b16 %v1489
    %v1529 = vunpack.c.l.b16 %v1490
    %v1530 = vunpack.c.l.b16 %v1491
    %v1531 = vunpack.c.l.b16 %v1492
    %v1532 = vunpack.c.l.b16 %v1493
    %v1533 = vunpack.c.l.b16 %v1494
    %v1534 = vunpack.c.l.b16 %v1495
    %v1535 = vunpack.c.l.b16 %v1496
    %v1536 = vunpack.c.l.b16 %v1497
    %v1537 = vunpack.c.l.b16 %v1498
    %v1538 = vunpack.c.l.b16 %v1499
    %v1539 = vunpack.c.l.b16 %v1500
    %v1540 = vunpack.c.l.b16 %v1501
    %v1541 = vunpack.c.l.b16 %v1502
    %v1542 = vunpack.c.l.b16 %v1503
    %v1543 = vpack.c.b16 %v1528, %v1527
    %v1544 = vpack.c.b16 %v1530, %v1529
    %v1545 = vpack.c.b16 %v1532, %v1531
    %v1546 = vpack.c.b16 %v1534, %v1533
    %v1547 = vpack.c.b16 %v1536, %v1535
    %v1548 = vpack.c.b16 %v1538, %v1537
    %v1549 = vpack.c.b16 %v1540, %v1539
    %v1550 = vpack.c.b16 %v1542, %v1541
    %1559 = vmatprep.subr.bf16.mxu0 0
    %1560 = vmatpush1.bf16.msra.mxu0 %v1543
    %1561 = vmatprep.subr.bf16.mxu0 0
    %1562 = vmatpush1.bf16.msra.mxu0 %v1544
    %1563 = vmatprep.subr.bf16.mxu0 0
    %1564 = vmatpush1.bf16.msra.mxu0 %v1545
    %1565 = vmatprep.subr.bf16.mxu0 0
    %1566 = vmatpush1.bf16.msra.mxu0 %v1546
    %1567 = vmatprep.subr.bf16.mxu0 0
    %1568 = vmatpush1.bf16.msra.mxu0 %v1547
    %1569 = vmatprep.subr.bf16.mxu0 0
    %1570 = vmatpush1.bf16.msra.mxu0 %v1548
    %1571 = vmatprep.subr.bf16.mxu0 0
    %1572 = vmatpush1.bf16.msra.mxu0 %v1549
    %1573 = vmatprep.subr.bf16.mxu0 0
    %1574 = vmatpush1.bf16.msra.mxu0 %v1550
    %1575 = vmatprep.subr.bf16.mxu0 0
    %1576 = vmatpush1.bf16.msra.mxu0 0
    %1577 = vmatprep.subr.bf16.mxu0 0
    %1578 = vmatpush1.bf16.msra.mxu0 0
    %1579 = vmatprep.subr.bf16.mxu0 0
    %1580 = vmatpush1.bf16.msra.mxu0 0
    %1581 = vmatprep.subr.bf16.mxu0 0
    %1582 = vmatpush1.bf16.msra.mxu0 0
    %1583 = vmatprep.subr.bf16.mxu0 0
    %1584 = vmatpush1.bf16.msra.mxu0 0
    %1585 = vmatprep.subr.bf16.mxu0 0
    %1586 = vmatpush1.bf16.msra.mxu0 0
    %1587 = vmatprep.subr.bf16.mxu0 0
    %1588 = vmatpush1.bf16.msra.mxu0 0
    %1589 = vmatprep.subr.bf16.mxu0 0
    %1590 = vmatpush1.bf16.msra.mxu0 0
    %1591 = vmatprep.mubr.bf16.mxu0 0
    %1592 = vmatmul.mubr.bf16.gmra.mrb[0].mxu0 %v1487
    %v1593 = vpop.f32.mrb[0].mxu0
    %v1594 = vadd.f32 %v1509, %v1593
    %v1595 = vpop.f32.mrb[0].mxu0
    %v1596 = vpop.f32.mrb[0].mxu0
    %v1597 = vpop.f32.mrb[0].mxu0
    %1598 = vdwg.mxu0
    %v1599 = vmax.f32 %v1594, 0.0
    %v1600 = vpack.c.bf16 %v1599, %v1599
    %v1601 = vld [vmem:[%s17] sm:$0xf]
    %v1602 = vld [vmem:[%s17 + $0x4] sm:$0xf]
    %v1603 = vld [vmem:[%s17 + $0x8] sm:$0xf]
    %v1604 = vld [vmem:[%s17 + $0xc] sm:$0xf]
    %v1605 = vld [vmem:[%s17 + $0x10] sm:$0xf]
    %v1606 = vld [vmem:[%s17 + $0x14] sm:$0xf]
    %v1607 = vld [vmem:[%s17 + $0x18] sm:$0xf]
    %v1608 = vld [vmem:[%s17 + $0x1c] sm:$0xf]
    %v1609 = vld [vmem:[%s17 + $0x20] sm:$0xf]
    %v1610 = vld [vmem:[%s17 + $0x24] sm:$0xf]
    %v1611 = vld [vmem:[%s17 + $0x28] sm:$0xf]
    %v1612 = vld [vmem:[%s17 + $0x2c] sm:$0xf]
    %v1613 = vld [vmem:[%s17 + $0x30] sm:$0xf]
    %v1614 = vld [vmem:[%s17 + $0x34] sm:$0xf]
    %v1615 = vld [vmem:[%s17 + $0x38] sm:$0xf]
    %v1616 = vld [vmem:[%s17 + $0x3c] sm:$0xf]
    %v1617 = vld [vmem:[%s18] sm:$0x1]
    %v1619 = vlaneseq
    %v1620 = vshrl.u32 %v1619, 7
    %v1621 = vsub.s32 0, %v1620
    %v1622 = vrot.slane %v1617, %v1621
    %v1640 = vunpack.c.l.b16 %v1601
    %v1641 = vunpack.c.l.b16 %v1602
    %v1642 = vunpack.c.l.b16 %v1603
    %v1643 = vunpack.c.l.b16 %v1604
    %v1644 = vunpack.c.l.b16 %v1605
    %v1645 = vunpack.c.l.b16 %v1606
    %v1646 = vunpack.c.l.b16 %v1607
    %v1647 = vunpack.c.l.b16 %v1608
    %v1648 = vunpack.c.l.b16 %v1609
    %v1649 = vunpack.c.l.b16 %v1610
    %v1650 = vunpack.c.l.b16 %v1611
    %v1651 = vunpack.c.l.b16 %v1612
    %v1652 = vunpack.c.l.b16 %v1613
    %v1653 = vunpack.c.l.b16 %v1614
    %v1654 = vunpack.c.l.b16 %v1615
    %v1655 = vunpack.c.l.b16 %v1616
    %v1656 = vpack.c.b16 %v1641, %v1640
    %v1657 = vpack.c.b16 %v1643, %v1642
    %v1658 = vpack.c.b16 %v1645, %v1644
    %v1659 = vpack.c.b16 %v1647, %v1646
    %v1660 = vpack.c.b16 %v1649, %v1648
    %v1661 = vpack.c.b16 %v1651, %v1650
    %v1662 = vpack.c.b16 %v1653, %v1652
    %v1663 = vpack.c.b16 %v1655, %v1654
    %1672 = vmatprep.subr.bf16.mxu0 0
    %1673 = vmatpush1.bf16.msra.mxu0 %v1656
    %1674 = vmatprep.subr.bf16.mxu0 0
    %1675 = vmatpush1.bf16.msra.mxu0 %v1657
    %1676 = vmatprep.subr.bf16.mxu0 0
    %1677 = vmatpush1.bf16.msra.mxu0 %v1658
    %1678 = vmatprep.subr.bf16.mxu0 0
    %1679 = vmatpush1.bf16.msra.mxu0 %v1659
    %1680 = vmatprep.subr.bf16.mxu0 0
    %1681 = vmatpush1.bf16.msra.mxu0 %v1660
    %1682 = vmatprep.subr.bf16.mxu0 0
    %1683 = vmatpush1.bf16.msra.mxu0 %v1661
    %1684 = vmatprep.subr.bf16.mxu0 0
    %1685 = vmatpush1.bf16.msra.mxu0 %v1662
    %1686 = vmatprep.subr.bf16.mxu0 0
    %1687 = vmatpush1.bf16.msra.mxu0 %v1663
    %1688 = vmatprep.subr.bf16.mxu0 0
    %1689 = vmatpush1.bf16.msra.mxu0 0
    %1690 = vmatprep.subr.bf16.mxu0 0
    %1691 = vmatpush1.bf16.msra.mxu0 0
    %1692 = vmatprep.subr.bf16.mxu0 0
    %1693 = vmatpush1.bf16.msra.mxu0 0
    %1694 = vmatprep.subr.bf16.mxu0 0
    %1695 = vmatpush1.bf16.msra.mxu0 0
    %1696 = vmatprep.subr.bf16.mxu0 0
    %1697 = vmatpush1.bf16.msra.mxu0 0
    %1698 = vmatprep.subr.bf16.mxu0 0
    %1699 = vmatpush1.bf16.msra.mxu0 0
    %1700 = vmatprep.subr.bf16.mxu0 0
    %1701 = vmatpush1.bf16.msra.mxu0 0
    %1702 = vmatprep.subr.bf16.mxu0 0
    %1703 = vmatpush1.bf16.msra.mxu0 0
    %1704 = vmatprep.mubr.bf16.mxu0 0
    %1705 = vmatmul.mubr.bf16.gmra.mrb[0].mxu0 %v1600
    %v1706 = vpop.f32.mrb[0].mxu0
    %v1707 = vadd.f32 %v1622, %v1706
    %v1708 = vpop.f32.mrb[0].mxu0
    %v1709 = vpop.f32.mrb[0].mxu0
    %v1710 = vpop.f32.mrb[0].mxu0
    %1711 = vdwg.mxu0
    %1712 = vst [vmem:[#allocation29] sm:$0xff] %v1707
    // Predicated region
    $region146: #{tpu_custom_call.1} parent=1 // pred_check
      _
    $region147: #{tpu_custom_call.1} parent=1 // pred_check_branch
      %1714 = sbr.rel (0) target = $region149
    $region148: #{tpu_custom_call.1} parent=1 // pred_region
      %s1716 = ssub.s32 128, 128
      %1717 = vsyncadd [#allocation4], %s1716
      %s1719 = sshll.u32 [#allocation29], 4
      %s1720 = int_to_ptr.vmem [resolvable:$true] %s1719
      %1722 = dma.vmem_to_hbm [thread:$0]  %s1720, 128, %s19, [#allocation4]
    $region149: #{tpu_custom_call.1} parent=1 // pred_fallthru
      _
    // Predicated region
    $region150: #{tpu_custom_call.1} parent=1 // pred_check
      _
    $region151: #{tpu_custom_call.1} parent=1 // pred_check_branch
      %1724 = sbr.rel (0) target = $region153
    $region152: #{tpu_custom_call.1} parent=1 // pred_region
      %1725 = dma.done [#allocation4], 128
    $region153: #{tpu_custom_call.1} parent=1 // pred_fallthru
      _
    %1726 = vsyncpa [#allocation3], 1
    %1727 = vsyncpa [#allocation6], 1
    %1728 = vsyncpa [#allocation9], 1
    %1729 = vsyncpa [#allocation12], 1
    %1730 = vsyncpa [#allocation15], 1
    %1731 = vsyncpa [#allocation18], 1
    %1732 = vsyncpa [#allocation21], 1
    %1733 = vsyncpa [#allocation24], 1
    %1734 = vsyncpa [#allocation27], 1
    %1735 = vsyncpa [#allocation4], 1

</llo_original>
